<compile_context>
chip_gen: v5e
topology: v5e:2x2
jax: 0.10.0
libtpu: 0.0.40
codegen_flags: <defaults>
</compile_context>

<pallas_src>
import jax
import jax.numpy as jnp
from jax import lax
from jax.experimental import pallas as pl
from jax.experimental.pallas import tpu as pltpu

_BIG = 3.0e38        # finite sentinel, safely inside float32 range
_HALF_BIG = 1.5e38   # padded-column "0.5*||x||^2" so 2*val stays finite


def _round_up(a, b):
    return -(-a // b) * b


def _fold_lanes(x, op):
    """(TM, TN) -> (TM, 128) via elementwise op over 128-lane groups (pure VPU)."""
    acc = x[:, 0:128]
    for g in range(1, x.shape[1] // 128):
        acc = op(acc, x[:, g * 128:(g + 1) * 128])
    return acc


def _make_kernel(margin, tn):
    margin = float(margin)  # static Python scalar -> no captured jnp constant

    def kernel(xr_ref, xc_ref, sqr_ref, hsqc_ref, tr_ref, tc_ref,
               loss_ref, ok_ref, ap_acc, an_acc):
        j = pl.program_id(1)

        @pl.when(j == 0)
        def _init():
            ap_acc[...] = jnp.full(ap_acc.shape, -_BIG, jnp.float32)
            an_acc[...] = jnp.full(an_acc.shape, _BIG, jnp.float32)

        # gram = xr @ xc^T, contracting dim 1 of both operands -> MXU directly,
        # no in-kernel transpose of the column tile.
        gram = lax.dot_general(
            xr_ref[...], xc_ref[...],
            dimension_numbers=(((1,), (1,)), ((), ())),
            preferred_element_type=jnp.float32)                 # (TM, TN)

        col0 = pl.multiple_of(j * tn, 128)
        half_sqc = hsqc_ref[:, pl.ds(col0, tn)]                 # (1, TN)
        tc = tc_ref[:, pl.ds(col0, tn)]                         # (1, TN)

        # Accumulate extrema of c = 0.5*||xc||^2 - <xr,xc>.  The per-row
        # constant ||xr||^2, the *2 and the clamp/sqrt are deferred to the
        # finalize branch (max/min commute with those monotone maps).
        c = half_sqc - gram                                     # (TM, TN)
        pos = tr_ref[...] == tc                                 # (TM, TN)
        ap_cand = jnp.where(pos, c, -_BIG)                      # hardest positive (max)
        an_cand = jnp.where(pos, _BIG, c)                       # hardest negative (min);
        # padded columns self-exclude from the min: their 0.5*||x||^2 is huge.

        ap_acc[...] = jnp.maximum(ap_acc[...], _fold_lanes(ap_cand, jnp.maximum))
        an_acc[...] = jnp.minimum(an_acc[...], _fold_lanes(an_cand, jnp.minimum))

        @pl.when(j == pl.num_programs(1) - 1)
        def _finalize():
            sqr = sqr_ref[...]                                  # (TM, 1)
            ap2 = sqr + 2.0 * jnp.max(ap_acc[...], axis=1, keepdims=True)
            an2 = sqr + 2.0 * jnp.min(an_acc[...], axis=1, keepdims=True)
            d_ap = jnp.sqrt(jnp.maximum(ap2, 1e-12))
            d_an = jnp.sqrt(jnp.maximum(an2, 1e-12))
            valid = tr_ref[...] >= 0                            # real rows only
            hinge = jnp.maximum(d_ap - d_an + margin, 0.0)
            loss_ref[...] = jnp.where(valid, hinge, 0.0)
            ok_ref[...] = (valid & (d_an >= d_ap)).astype(jnp.float32)

    return kernel


def _pick_tiles(n_pad):
    # column tile: multiple of 128, prefer 256 (v6e/v7x MXU is 256-wide)
    tn = 256 if (n_pad % 256 == 0 and n_pad >= 256) else 128
    # row tile: as large as possible (<=512) while dividing n_pad; keep >=2 row
    # blocks when the batch allows so v7x megacore shards the parallel axis.
    cap = min(512, n_pad // 2 if n_pad >= 256 else n_pad)
    tm = 128
    for t in (512, 384, 256, 128):
        if t <= cap and n_pad % t == 0:
            tm = t
            break
    return tm, tn


def _vmem_limit_bytes(tm, tn, d_pad, n_pad):
    f = 4
    b = 2 * (tm + tn) * d_pad * f       # double-buffered feature tiles
    b += 2 * 2 * tm * 128 * f           # row norms + row labels (lane-padded, dbl-buf)
    b += 2 * 2 * n_pad * f              # resident col norms + col labels
    b += 2 * tm * 128 * f               # two output tiles (lane-padded)
    b += 2 * tm * 128 * f               # two accumulator scratch buffers
    return int(min(100 * (1 << 20), max(32 * (1 << 20), 2 * b)))


def triplet_loss(inputs, targets, margin=0.3):
    """inputs: (N, D) float features, targets: (N,) int labels -> (loss, correct)."""
    n, d = inputs.shape
    d_pad = _round_up(d, 128)
    n_pad = _round_up(n, 128)
    tm, tn = _pick_tiles(n_pad)

    # Zero-pad features (does not change norms / dot products); pad labels = -1.
    x = jnp.zeros((n_pad, d_pad), dtype=jnp.float32).at[:n, :d].set(
        inputs.astype(jnp.float32))
    t = jnp.full((n_pad,), -1, dtype=jnp.int32).at[:n].set(targets.astype(jnp.int32))
    sq = jnp.sum(x * x, axis=1)                                  # (Npad,)
    # 0.5*||x||^2 along columns; padded columns get a huge value so they
    # auto-exclude themselves from the hardest-negative min in-kernel.
    half_sq_col = jnp.where(t >= 0, 0.5 * sq, _HALF_BIG)         # (Npad,)

    grid = (n_pad // tm, n_pad // tn)
    loss_vec, ok_vec = pl.pallas_call(
        _make_kernel(margin, tn),
        grid=grid,
        in_specs=[
            pl.BlockSpec((tm, d_pad), lambda i, j: (i, 0)),   # anchor row tile
            pl.BlockSpec((tn, d_pad), lambda i, j: (j, 0)),   # candidate col tile
            pl.BlockSpec((tm, 1), lambda i, j: (i, 0)),       # row ||x||^2
            pl.BlockSpec((1, n_pad), lambda i, j: (0, 0)),    # all col 0.5*||x||^2 (resident)
            pl.BlockSpec((tm, 1), lambda i, j: (i, 0)),       # row labels
            pl.BlockSpec((1, n_pad), lambda i, j: (0, 0)),    # all col labels (resident)
        ],
        out_specs=(
            pl.BlockSpec((tm, 1), lambda i, j: (i, 0)),       # per-row hinge loss
            pl.BlockSpec((tm, 1), lambda i, j: (i, 0)),       # per-row correct flag
        ),
        out_shape=(
            jax.ShapeDtypeStruct((n_pad, 1), jnp.float32),
            jax.ShapeDtypeStruct((n_pad, 1), jnp.float32),
        ),
        scratch_shapes=[
            pltpu.VMEM((tm, 128), jnp.float32),   # running max of 0.5*sqc - gram (positives)
            pltpu.VMEM((tm, 128), jnp.float32),   # running min of 0.5*sqc - gram (negatives)
        ],
        compiler_params=pltpu.CompilerParams(
            dimension_semantics=("parallel", "arbitrary"),
            vmem_limit_bytes=_vmem_limit_bytes(tm, tn, d_pad, n_pad)),
        cost_estimate=pl.CostEstimate(
            flops=2 * n_pad * n_pad * d_pad,
            transcendentals=2 * n_pad,
            bytes_accessed=(n_pad // tm + 1) * n_pad * d_pad * 4 + 10 * n_pad * 4),
    )(x, x, sq.reshape(n_pad, 1), half_sq_col.reshape(1, n_pad),
      t.reshape(n_pad, 1), t.reshape(1, n_pad))

    loss = jnp.sum(loss_vec) / jnp.float32(n)
    correct = jnp.sum(ok_vec).astype(jnp.int32)
    return loss, correct


def _reference(inputs, targets, margin=0.3):
    # pure-JAX reference (mirrors the PyTorch module)
    x = inputs.astype(jnp.float32)
    sq = jnp.sum(x * x, axis=1, keepdims=True)
    dist = jnp.sqrt(jnp.maximum(sq + sq.T - 2.0 * (x @ x.T), 1e-12))
    mask = targets[:, None] == targets[None, :]
    dist_ap = jnp.max(jnp.where(mask, dist, -jnp.inf), axis=1)
    dist_an = jnp.min(jnp.where(mask, jnp.inf, dist), axis=1)
    loss = jnp.mean(jnp.maximum(dist_ap - dist_an + margin, 0.0))
    correct = jnp.sum(dist_an >= dist_ap)
    return loss, correct


if __name__ == "__main__":
    key = jax.random.PRNGKey(0)
    k1, k2 = jax.random.split(key)

    # Small case: batch=8, feat_dim=32, 4 classes x 2 samples (pos & neg exist).
    x_small = jax.random.normal(k1, (8, 32), dtype=jnp.float32)
    t_small = jnp.array([0, 0, 1, 1, 2, 2, 3, 3], dtype=jnp.int32)
    loss, correct = triplet_loss(x_small, t_small, margin=0.3)
    jax.block_until_ready((loss, correct))
    ref_loss, ref_correct = _reference(x_small, t_small, margin=0.3)
    assert jnp.allclose(loss, ref_loss, rtol=1e-5, atol=1e-5), (loss, ref_loss)
    assert int(correct) == int(ref_correct), (correct, ref_correct)

    # Larger case exercising the tiled multi-block grid + row/feature padding.
    x_big = jax.random.normal(k2, (300, 200), dtype=jnp.float32)
    t_big = (jnp.arange(300, dtype=jnp.int32) % 7).astype(jnp.int32)
    loss_b, correct_b = triplet_loss(x_big, t_big, margin=0.3)
    jax.block_until_ready((loss_b, correct_b))
    ref_loss_b, ref_correct_b = _reference(x_big, t_big, margin=0.3)
    assert jnp.allclose(loss_b, ref_loss_b, rtol=1e-4, atol=1e-4), (loss_b, ref_loss_b)
    assert int(correct_b) == int(ref_correct_b), (correct_b, ref_correct_b)

    print("KERNEL_OK")
</pallas_src>

<mosaic_0001>
module attributes {stable_mosaic.version = 11 : i64} {
  func.func @kernel(%arg0: i32, %arg1: i32, %arg2: memref<128x128xf32, #tpu.memory_space<vmem>>, %arg3: memref<128x128xf32, #tpu.memory_space<vmem>>, %arg4: memref<128x1xf32, #tpu.memory_space<vmem>>, %arg5: memref<1x128xf32, #tpu.memory_space<vmem>>, %arg6: memref<128x1xi32, #tpu.memory_space<vmem>>, %arg7: memref<1x128xi32, #tpu.memory_space<vmem>>, %arg8: memref<128x1xf32, #tpu.memory_space<vmem>>, %arg9: memref<128x1xf32, #tpu.memory_space<vmem>>, %arg10: memref<128x128xf32, #tpu.memory_space<vmem>>, %arg11: memref<128x128xf32, #tpu.memory_space<vmem>>) attributes {dimension_semantics = [#tpu.dimension_semantics<parallel>, #tpu.dimension_semantics<arbitrary>], iteration_bounds = array<i64: 1, 1>, scalar_prefetch = 0 : i64, scratch_operands = 2 : i64, tpu.core_type = #tpu.core_type<tc>, window_params = [{transform_indices = @transform_0, window_bounds = array<i64: 128, 128>}, {transform_indices = @transform_1, window_bounds = array<i64: 128, 128>}, {transform_indices = @transform_2, window_bounds = array<i64: 128, 1>}, {pipeline_mode = #tpu.pipeline_mode<synchronous>, transform_indices = @transform_3, window_bounds = array<i64: 1, 128>}, {transform_indices = @transform_4, window_bounds = array<i64: 128, 1>}, {pipeline_mode = #tpu.pipeline_mode<synchronous>, transform_indices = @transform_5, window_bounds = array<i64: 1, 128>}, {transform_indices = @transform_6, window_bounds = array<i64: 128, 1>}, {transform_indices = @transform_7, window_bounds = array<i64: 128, 1>}]} {
    %c0_i32 = arith.constant 0 : i32
    %0 = arith.cmpi eq, %arg1, %c0_i32 : i32
    %1 = arith.extui %0 : i1 to i32
    %c0_i32_0 = arith.constant 0 : i32
    %2 = arith.cmpi ne, %1, %c0_i32_0 : i32
    scf.if %2 {
      %cst_20 = arith.constant -3.000000e+38 : f32
      %31 = vector.broadcast %cst_20 : f32 to vector<128x128xf32>
      %c0_21 = arith.constant 0 : index
      %c0_22 = arith.constant 0 : index
      %32 = vector.load %arg10[%c0_21, %c0_22] : memref<128x128xf32, #tpu.memory_space<vmem>>, vector<128x128xf32>
      tpu.vector_store %arg10[%c0_21, %c0_22], %31 {strides = array<i32>} : memref<128x128xf32, #tpu.memory_space<vmem>>, vector<128x128xf32>,
      %cst_23 = arith.constant 3.000000e+38 : f32
      %33 = vector.broadcast %cst_23 : f32 to vector<128x128xf32>
      %c0_24 = arith.constant 0 : index
      %c0_25 = arith.constant 0 : index
      %34 = vector.load %arg11[%c0_24, %c0_25] : memref<128x128xf32, #tpu.memory_space<vmem>>, vector<128x128xf32>
      tpu.vector_store %arg11[%c0_24, %c0_25], %33 {strides = array<i32>} : memref<128x128xf32, #tpu.memory_space<vmem>>, vector<128x128xf32>,
    } else {
    }
    %c0 = arith.constant 0 : index
    %c0_1 = arith.constant 0 : index
    %3 = vector.load %arg2[%c0, %c0_1] : memref<128x128xf32, #tpu.memory_space<vmem>>, vector<128x128xf32>
    %c0_2 = arith.constant 0 : index
    %c0_3 = arith.constant 0 : index
    %4 = vector.load %arg3[%c0_2, %c0_3] : memref<128x128xf32, #tpu.memory_space<vmem>>, vector<128x128xf32>
    %cst = arith.constant dense<0.000000e+00> : vector<128x128xf32>
    %5 = tpu.matmul %3, %4, %cst {dimension_numbers = #tpu.dot_dimension_numbers<[1], [1], [0], [0], [0, 0, 1, 0], [], []>} : vector<128x128xf32>, vector<128x128xf32>, vector<128x128xf32> -> vector<128x128xf32>
    %c128_i32 = arith.constant 128 : i32
    %6 = arith.muli %arg1, %c128_i32 : i32
    %7 = tpu.assume_multiple %6, 128 : i32
    %c0_4 = arith.constant 0 : index
    %8 = arith.index_cast %7 : i32 to index
    %9 = vector.load %arg5[%c0_4, %8] : memref<1x128xf32, #tpu.memory_space<vmem>>, vector<1x128xf32>
    %c0_5 = arith.constant 0 : index
    %10 = arith.index_cast %7 : i32 to index
    %11 = vector.load %arg7[%c0_5, %10] : memref<1x128xi32, #tpu.memory_space<vmem>>, vector<1x128xi32>
    %12 = vector.broadcast %9 : vector<1x128xf32> to vector<128x128xf32>
    %13 = arith.subf %12, %5 : vector<128x128xf32>
    %c0_6 = arith.constant 0 : index
    %c0_7 = arith.constant 0 : index
    %14 = vector.load %arg6[%c0_6, %c0_7] : memref<128x1xi32, #tpu.memory_space<vmem>>, vector<128x1xi32>
    %15 = vector.broadcast %14 : vector<128x1xi32> to vector<128x128xi32>
    %16 = vector.broadcast %11 : vector<1x128xi32> to vector<128x128xi32>
    %17 = arith.cmpi eq, %15, %16 : vector<128x128xi32>
    %cst_8 = arith.constant -3.000000e+38 : f32
    %18 = vector.broadcast %cst_8 : f32 to vector<128x128xf32>
    %19 = arith.select %17, %13, %18 : vector<128x128xi1>, vector<128x128xf32>
    %cst_9 = arith.constant 3.000000e+38 : f32
    %20 = vector.broadcast %cst_9 : f32 to vector<128x128xf32>
    %21 = arith.select %17, %20, %13 : vector<128x128xi1>, vector<128x128xf32>
    %c0_10 = arith.constant 0 : index
    %c0_11 = arith.constant 0 : index
    %22 = vector.load %arg10[%c0_10, %c0_11] : memref<128x128xf32, #tpu.memory_space<vmem>>, vector<128x128xf32>
    %23 = arith.maximumf %22, %19 : vector<128x128xf32>
    %c0_12 = arith.constant 0 : index
    %c0_13 = arith.constant 0 : index
    %24 = vector.load %arg10[%c0_12, %c0_13] : memref<128x128xf32, #tpu.memory_space<vmem>>, vector<128x128xf32>
    tpu.vector_store %arg10[%c0_12, %c0_13], %23 {strides = array<i32>} : memref<128x128xf32, #tpu.memory_space<vmem>>, vector<128x128xf32>,
    %c0_14 = arith.constant 0 : index
    %c0_15 = arith.constant 0 : index
    %25 = vector.load %arg11[%c0_14, %c0_15] : memref<128x128xf32, #tpu.memory_space<vmem>>, vector<128x128xf32>
    %26 = arith.minimumf %25, %21 : vector<128x128xf32>
    %c0_16 = arith.constant 0 : index
    %c0_17 = arith.constant 0 : index
    %27 = vector.load %arg11[%c0_16, %c0_17] : memref<128x128xf32, #tpu.memory_space<vmem>>, vector<128x128xf32>
    tpu.vector_store %arg11[%c0_16, %c0_17], %26 {strides = array<i32>} : memref<128x128xf32, #tpu.memory_space<vmem>>, vector<128x128xf32>,
    %c0_i32_18 = arith.constant 0 : i32
    %28 = arith.cmpi eq, %arg1, %c0_i32_18 : i32
    %29 = arith.extui %28 : i1 to i32
    %c0_i32_19 = arith.constant 0 : i32
    %30 = arith.cmpi ne, %29, %c0_i32_19 : i32
    scf.if %30 {
      %c0_20 = arith.constant 0 : index
      %c0_21 = arith.constant 0 : index
      %31 = vector.load %arg4[%c0_20, %c0_21] : memref<128x1xf32, #tpu.memory_space<vmem>>, vector<128x1xf32>
      %c0_22 = arith.constant 0 : index
      %c0_23 = arith.constant 0 : index
      %32 = vector.load %arg10[%c0_22, %c0_23] : memref<128x128xf32, #tpu.memory_space<vmem>>, vector<128x128xf32>
      %cst_24 = arith.constant dense<0xFF800000> : vector<128xf32>
      %33 = vector.multi_reduction <maximumf>, %32, %cst_24 [1] : vector<128x128xf32> to vector<128xf32>
      %34 = vector.shape_cast %33 : vector<128xf32> to vector<128x1xf32>
      %cst_25 = arith.constant 2.000000e+00 : f32
      %35 = vector.broadcast %cst_25 : f32 to vector<128x1xf32>
      %36 = arith.mulf %35, %34 : vector<128x1xf32>
      %37 = arith.addf %31, %36 : vector<128x1xf32>
      %c0_26 = arith.constant 0 : index
      %c0_27 = arith.constant 0 : index
      %38 = vector.load %arg11[%c0_26, %c0_27] : memref<128x128xf32, #tpu.memory_space<vmem>>, vector<128x128xf32>
      %cst_28 = arith.constant dense<0x7F800000> : vector<128xf32>
      %39 = vector.multi_reduction <minimumf>, %38, %cst_28 [1] : vector<128x128xf32> to vector<128xf32>
      %40 = vector.shape_cast %39 : vector<128xf32> to vector<128x1xf32>
      %cst_29 = arith.constant 2.000000e+00 : f32
      %41 = vector.broadcast %cst_29 : f32 to vector<128x1xf32>
      %42 = arith.mulf %41, %40 : vector<128x1xf32>
      %43 = arith.addf %31, %42 : vector<128x1xf32>
      %cst_30 = arith.constant 9.99999996E-13 : f32
      %44 = vector.broadcast %cst_30 : f32 to vector<128x1xf32>
      %45 = arith.maximumf %37, %44 : vector<128x1xf32>
      %46 = math.sqrt %45 : vector<128x1xf32>
      %cst_31 = arith.constant 9.99999996E-13 : f32
      %47 = vector.broadcast %cst_31 : f32 to vector<128x1xf32>
      %48 = arith.maximumf %43, %47 : vector<128x1xf32>
      %49 = math.sqrt %48 : vector<128x1xf32>
      %c0_32 = arith.constant 0 : index
      %c0_33 = arith.constant 0 : index
      %50 = vector.load %arg6[%c0_32, %c0_33] : memref<128x1xi32, #tpu.memory_space<vmem>>, vector<128x1xi32>
      %c0_i32_34 = arith.constant 0 : i32
      %51 = vector.broadcast %c0_i32_34 : i32 to vector<128x1xi32>
      %52 = arith.cmpi sge, %50, %51 : vector<128x1xi32>
      %53 = arith.subf %46, %49 : vector<128x1xf32>
      %cst_35 = arith.constant 3.000000e-01 : f32
      %54 = vector.broadcast %cst_35 : f32 to vector<128x1xf32>
      %55 = arith.addf %53, %54 : vector<128x1xf32>
      %cst_36 = arith.constant 0.000000e+00 : f32
      %56 = vector.broadcast %cst_36 : f32 to vector<128x1xf32>
      %57 = arith.maximumf %55, %56 : vector<128x1xf32>
      %cst_37 = arith.constant 0.000000e+00 : f32
      %58 = vector.broadcast %cst_37 : f32 to vector<128x1xf32>
      %59 = arith.select %52, %57, %58 : vector<128x1xi1>, vector<128x1xf32>
      %c0_38 = arith.constant 0 : index
      %c0_39 = arith.constant 0 : index
      %60 = vector.load %arg8[%c0_38, %c0_39] : memref<128x1xf32, #tpu.memory_space<vmem>>, vector<128x1xf32>
      tpu.vector_store %arg8[%c0_38, %c0_39], %59 {strides = array<i32>} : memref<128x1xf32, #tpu.memory_space<vmem>>, vector<128x1xf32>,
      %61 = arith.cmpf oge, %49, %46 : vector<128x1xf32>
      %62 = arith.andi %52, %61 : vector<128x1xi1>
      %63 = arith.extui %62 : vector<128x1xi1> to vector<128x1xi32>
      %64 = arith.sitofp %63 : vector<128x1xi32> to vector<128x1xf32>
      %c0_40 = arith.constant 0 : index
      %c0_41 = arith.constant 0 : index
      %65 = vector.load %arg9[%c0_40, %c0_41] : memref<128x1xf32, #tpu.memory_space<vmem>>, vector<128x1xf32>
      tpu.vector_store %arg9[%c0_40, %c0_41], %64 {strides = array<i32>} : memref<128x1xf32, #tpu.memory_space<vmem>>, vector<128x1xf32>,
    } else {
    }
    return
  }
  func.func @transform_0(%arg0: i32, %arg1: i32) -> (i32, i32) {
    %c0_i32 = arith.constant 0 : i32
    %c0_i32_0 = arith.constant 0 : i32
    return %arg0, %c0_i32 : i32, i32
  }
  func.func @transform_1(%arg0: i32, %arg1: i32) -> (i32, i32) {
    %c0_i32 = arith.constant 0 : i32
    %c0_i32_0 = arith.constant 0 : i32
    return %arg1, %c0_i32 : i32, i32
  }
  func.func @transform_2(%arg0: i32, %arg1: i32) -> (i32, i32) {
    %c0_i32 = arith.constant 0 : i32
    %c0_i32_0 = arith.constant 0 : i32
    return %arg0, %c0_i32 : i32, i32
  }
  func.func @transform_3(%arg0: i32, %arg1: i32) -> (i32, i32) {
    %c0_i32 = arith.constant 0 : i32
    %c0_i32_0 = arith.constant 0 : i32
    %c0_i32_1 = arith.constant 0 : i32
    return %c0_i32, %c0_i32_0 : i32, i32
  }
  func.func @transform_4(%arg0: i32, %arg1: i32) -> (i32, i32) {
    %c0_i32 = arith.constant 0 : i32
    %c0_i32_0 = arith.constant 0 : i32
    return %arg0, %c0_i32 : i32, i32
  }
  func.func @transform_5(%arg0: i32, %arg1: i32) -> (i32, i32) {
    %c0_i32 = arith.constant 0 : i32
    %c0_i32_0 = arith.constant 0 : i32
    %c0_i32_1 = arith.constant 0 : i32
    return %c0_i32, %c0_i32_0 : i32, i32
  }
  func.func @transform_6(%arg0: i32, %arg1: i32) -> (i32, i32) {
    %c0_i32 = arith.constant 0 : i32
    %c0_i32_0 = arith.constant 0 : i32
    return %arg0, %c0_i32 : i32, i32
  }
  func.func @transform_7(%arg0: i32, %arg1: i32) -> (i32, i32) {
    %c0_i32 = arith.constant 0 : i32
    %c0_i32_0 = arith.constant 0 : i32
    return %arg0, %c0_i32 : i32, i32
  }
}

</mosaic_0001>

<llo_original>
// kernel: tpu_custom_call.1
$region0: #{tpu_custom_call.1}
  #allocation0 [shape = 'u32[]', space=smem, size = 0x4, offset = 0x4, fixed_abs, tag = 'smem constant byte address 0x4 - core index']
  #allocation1 [shape = 'u32[72,128]{1,0:T(1,128)}', space=vmem, size = 0x9000, scoped, tag = 'internal scratch']
  #allocation2 [shape = 'f32[128,128]{1,0:T(8,128)}', space=vmem, size = 0x10000, scoped, tag = 'scratch operand']
  #allocation3 [shape = 'f32[128,128]{1,0:T(8,128)}', space=vmem, size = 0x10000, scoped, tag = 'scratch operand']
  %s0 = inlined_call_operand.vmem [shape: f32[128,128], index: 0, kind: input, shape index: {}]
  %s1 = inlined_call_operand.vmem [shape: f32[128,128], index: 1, kind: input, shape index: {}]
  %s2 = inlined_call_operand.vmem [shape: f32[128,1], index: 2, kind: input, shape index: {}]
  %s3 = inlined_call_operand.vmem [shape: f32[1,128], index: 3, kind: input, shape index: {}]
  %s4 = inlined_call_operand.vmem [shape: s32[128,1], index: 4, kind: input, shape index: {}]
  %s5 = inlined_call_operand.vmem [shape: s32[1,128], index: 5, kind: input, shape index: {}]
  %s6 = inlined_call_operand.vmem [shape: f32[128,1], index: 6, kind: output, shape index: {0}]
  %s7 = inlined_call_operand.vmem [shape: f32[128,1], index: 7, kind: output, shape index: {1}]
  %8 = xla_tuple %s6, %s7
  %s9 = sld [smem:[#allocation0]]
  $region50: #{tpu_custom_call.1} parent=0
    _
  %s11 = ssub.s32 1, %s9
  %s12 = scalar_select 0, %s11, %s9
  // Predicated region
  $region2: #{tpu_custom_call.1} parent=0 // pred_check
    _
  $region3: #{tpu_custom_call.1} parent=0 // pred_check_branch
    %14 = sbr.rel (0) target = $region5
  $region4: #{tpu_custom_call.1} parent=0 // pred_region
    _
  $region5: #{tpu_custom_call.1} parent=0 // pred_fallthru
    _
  // Predicated region
  $region6: #{tpu_custom_call.1} parent=0 // pred_check
    _
  $region7: #{tpu_custom_call.1} parent=0 // pred_check_branch
    %16 = sbr.rel (0) target = $region9
  $region8: #{tpu_custom_call.1} parent=0 // pred_region
    _
  $region9: #{tpu_custom_call.1} parent=0 // pred_fallthru
    _
  // Predicated region
  $region10: #{tpu_custom_call.1} parent=0 // pred_check
    _
  $region11: #{tpu_custom_call.1} parent=0 // pred_check_branch
    %18 = sbr.rel (0) target = $region13
  $region12: #{tpu_custom_call.1} parent=0 // pred_region
    _
  $region13: #{tpu_custom_call.1} parent=0 // pred_fallthru
    _
  // Predicated region
  $region14: #{tpu_custom_call.1} parent=0 // pred_check
    _
  $region15: #{tpu_custom_call.1} parent=0 // pred_check_branch
    %20 = sbr.rel (0) target = $region17
  $region16: #{tpu_custom_call.1} parent=0 // pred_region
    _
  $region17: #{tpu_custom_call.1} parent=0 // pred_fallthru
    _
  // Predicated region
  $region18: #{tpu_custom_call.1} parent=0 // pred_check
    _
  $region19: #{tpu_custom_call.1} parent=0 // pred_check_branch
    %22 = sbr.rel (0) target = $region21
  $region20: #{tpu_custom_call.1} parent=0 // pred_region
    _
  $region21: #{tpu_custom_call.1} parent=0 // pred_fallthru
    _
  // Predicated region
  $region22: #{tpu_custom_call.1} parent=0 // pred_check
    _
  $region23: #{tpu_custom_call.1} parent=0 // pred_check_branch
    %24 = sbr.rel (0) target = $region25
  $region24: #{tpu_custom_call.1} parent=0 // pred_region
    _
  $region25: #{tpu_custom_call.1} parent=0 // pred_fallthru
    _
  %p25 = scmp.eq.s32.totalorder 0, 0
  // Predicated region
  $region26: #{tpu_custom_call.1} parent=0 // pred_check
    %p26 = pneg %p25
  $region27: #{tpu_custom_call.1} parent=0 // pred_check_branch
    %28 = sbr.rel (%p26) target = $region29
  $region28: #{tpu_custom_call.1} parent=0 // pred_region
    %29 = vst [vmem:[#allocation2] sm:$0xff] -3e+38
    %30 = vst [vmem:[#allocation2 + $0x8] sm:$0xff] -3e+38
    %31 = vst [vmem:[#allocation2 + $0x10] sm:$0xff] -3e+38
    %32 = vst [vmem:[#allocation2 + $0x18] sm:$0xff] -3e+38
    %33 = vst [vmem:[#allocation2 + $0x20] sm:$0xff] -3e+38
    %34 = vst [vmem:[#allocation2 + $0x28] sm:$0xff] -3e+38
    %35 = vst [vmem:[#allocation2 + $0x30] sm:$0xff] -3e+38
    %36 = vst [vmem:[#allocation2 + $0x38] sm:$0xff] -3e+38
    %37 = vst [vmem:[#allocation2 + $0x40] sm:$0xff] -3e+38
    %38 = vst [vmem:[#allocation2 + $0x48] sm:$0xff] -3e+38
    %39 = vst [vmem:[#allocation2 + $0x50] sm:$0xff] -3e+38
    %40 = vst [vmem:[#allocation2 + $0x58] sm:$0xff] -3e+38
    %41 = vst [vmem:[#allocation2 + $0x60] sm:$0xff] -3e+38
    %42 = vst [vmem:[#allocation2 + $0x68] sm:$0xff] -3e+38
    %43 = vst [vmem:[#allocation2 + $0x70] sm:$0xff] -3e+38
    %44 = vst [vmem:[#allocation2 + $0x78] sm:$0xff] -3e+38
    %45 = vst [vmem:[#allocation3] sm:$0xff] 3e+38
    %46 = vst [vmem:[#allocation3 + $0x8] sm:$0xff] 3e+38
    %47 = vst [vmem:[#allocation3 + $0x10] sm:$0xff] 3e+38
    %48 = vst [vmem:[#allocation3 + $0x18] sm:$0xff] 3e+38
    %49 = vst [vmem:[#allocation3 + $0x20] sm:$0xff] 3e+38
    %50 = vst [vmem:[#allocation3 + $0x28] sm:$0xff] 3e+38
    %51 = vst [vmem:[#allocation3 + $0x30] sm:$0xff] 3e+38
    %52 = vst [vmem:[#allocation3 + $0x38] sm:$0xff] 3e+38
    %53 = vst [vmem:[#allocation3 + $0x40] sm:$0xff] 3e+38
    %54 = vst [vmem:[#allocation3 + $0x48] sm:$0xff] 3e+38
    %55 = vst [vmem:[#allocation3 + $0x50] sm:$0xff] 3e+38
    %56 = vst [vmem:[#allocation3 + $0x58] sm:$0xff] 3e+38
    %57 = vst [vmem:[#allocation3 + $0x60] sm:$0xff] 3e+38
    %58 = vst [vmem:[#allocation3 + $0x68] sm:$0xff] 3e+38
    %59 = vst [vmem:[#allocation3 + $0x70] sm:$0xff] 3e+38
    %60 = vst [vmem:[#allocation3 + $0x78] sm:$0xff] 3e+38
  $region29: #{tpu_custom_call.1} parent=0 // pred_fallthru
    _
  %v61 = vld [vmem:[%s0] sm:$0xff]
  %v62 = vld [vmem:[%s0 + $0x8] sm:$0xff]
  %v63 = vld [vmem:[%s0 + $0x10] sm:$0xff]
  %v64 = vld [vmem:[%s0 + $0x18] sm:$0xff]
  %v65 = vld [vmem:[%s0 + $0x20] sm:$0xff]
  %v66 = vld [vmem:[%s0 + $0x28] sm:$0xff]
  %v67 = vld [vmem:[%s0 + $0x30] sm:$0xff]
  %v68 = vld [vmem:[%s0 + $0x38] sm:$0xff]
  %v69 = vld [vmem:[%s0 + $0x40] sm:$0xff]
  %v70 = vld [vmem:[%s0 + $0x48] sm:$0xff]
  %v71 = vld [vmem:[%s0 + $0x50] sm:$0xff]
  %v72 = vld [vmem:[%s0 + $0x58] sm:$0xff]
  %v73 = vld [vmem:[%s0 + $0x60] sm:$0xff]
  %v74 = vld [vmem:[%s0 + $0x68] sm:$0xff]
  %v75 = vld [vmem:[%s0 + $0x70] sm:$0xff]
  %v76 = vld [vmem:[%s0 + $0x78] sm:$0xff]
  %v77 = vld [vmem:[%s1] sm:$0xff]
  %v78 = vld [vmem:[%s1 + $0x8] sm:$0xff]
  %v79 = vld [vmem:[%s1 + $0x10] sm:$0xff]
  %v80 = vld [vmem:[%s1 + $0x18] sm:$0xff]
  %v81 = vld [vmem:[%s1 + $0x20] sm:$0xff]
  %v82 = vld [vmem:[%s1 + $0x28] sm:$0xff]
  %v83 = vld [vmem:[%s1 + $0x30] sm:$0xff]
  %v84 = vld [vmem:[%s1 + $0x38] sm:$0xff]
  %v85 = vld [vmem:[%s1 + $0x40] sm:$0xff]
  %v86 = vld [vmem:[%s1 + $0x48] sm:$0xff]
  %v87 = vld [vmem:[%s1 + $0x50] sm:$0xff]
  %v88 = vld [vmem:[%s1 + $0x58] sm:$0xff]
  %v89 = vld [vmem:[%s1 + $0x60] sm:$0xff]
  %v90 = vld [vmem:[%s1 + $0x68] sm:$0xff]
  %v91 = vld [vmem:[%s1 + $0x70] sm:$0xff]
  %v92 = vld [vmem:[%s1 + $0x78] sm:$0xff]
  %93 = vmatpush.xpose.msra.mxu0 %v92
  %94 = vmatpush.xpose.msra.mxu0 %v91
  %95 = vmatpush.xpose.msra.mxu0 %v90
  %96 = vmatpush.xpose.msra.mxu0 %v89
  %97 = vmatpush.xpose.msra.mxu0 %v88
  %98 = vmatpush.xpose.msra.mxu0 %v87
  %99 = vmatpush.xpose.msra.mxu0 %v86
  %100 = vmatpush.xpose.msra.mxu0 %v85
  %101 = vmatpush.xpose.msra.mxu0 %v84
  %102 = vmatpush.xpose.msra.mxu0 %v83
  %103 = vmatpush.xpose.msra.mxu0 %v82
  %104 = vmatpush.xpose.msra.mxu0 %v81
  %105 = vmatpush.xpose.msra.mxu0 %v80
  %106 = vmatpush.xpose.msra.mxu0 %v79
  %107 = vmatpush.xpose.msra.mxu0 %v78
  %108 = vmatpush.xpose.msra.mxu0 %v77
  %109 = vmatmul.f32.gmra.mxu0 %v61
  %v110 = vpop.f32.mrf.mxu0
  %v111 = vadd.f32 0.0, %v110
  %112 = vmatmul.f32.gmra.mxu0 %v62
  %v113 = vpop.f32.mrf.mxu0
  %v114 = vadd.f32 0.0, %v113
  %115 = vmatmul.f32.gmra.mxu0 %v63
  %v116 = vpop.f32.mrf.mxu0
  %v117 = vadd.f32 0.0, %v116
  %118 = vmatmul.f32.gmra.mxu0 %v64
  %v119 = vpop.f32.mrf.mxu0
  %v120 = vadd.f32 0.0, %v119
  %121 = vmatmul.f32.gmra.mxu0 %v65
  %v122 = vpop.f32.mrf.mxu0
  %v123 = vadd.f32 0.0, %v122
  %124 = vmatmul.f32.gmra.mxu0 %v66
  %v125 = vpop.f32.mrf.mxu0
  %v126 = vadd.f32 0.0, %v125
  %127 = vmatmul.f32.gmra.mxu0 %v67
  %v128 = vpop.f32.mrf.mxu0
  %v129 = vadd.f32 0.0, %v128
  %130 = vmatmul.f32.gmra.mxu0 %v68
  %v131 = vpop.f32.mrf.mxu0
  %v132 = vadd.f32 0.0, %v131
  %133 = vmatmul.f32.gmra.mxu0 %v69
  %v134 = vpop.f32.mrf.mxu0
  %v135 = vadd.f32 0.0, %v134
  %136 = vmatmul.f32.gmra.mxu0 %v70
  %v137 = vpop.f32.mrf.mxu0
  %v138 = vadd.f32 0.0, %v137
  %139 = vmatmul.f32.gmra.mxu0 %v71
  %v140 = vpop.f32.mrf.mxu0
  %v141 = vadd.f32 0.0, %v140
  %142 = vmatmul.f32.gmra.mxu0 %v72
  %v143 = vpop.f32.mrf.mxu0
  %v144 = vadd.f32 0.0, %v143
  %145 = vmatmul.f32.gmra.mxu0 %v73
  %v146 = vpop.f32.mrf.mxu0
  %v147 = vadd.f32 0.0, %v146
  %148 = vmatmul.f32.gmra.mxu0 %v74
  %v149 = vpop.f32.mrf.mxu0
  %v150 = vadd.f32 0.0, %v149
  %151 = vmatmul.f32.gmra.mxu0 %v75
  %v152 = vpop.f32.mrf.mxu0
  %v153 = vadd.f32 0.0, %v152
  %154 = vmatmul.f32.gmra.mxu0 %v76
  %v155 = vpop.f32.mrf.mxu0
  %v156 = vadd.f32 0.0, %v155
  %157 = vdwg.mxu0
  %s158 = smul.u32 0, 128
  %s159 = sshra.s32 %s158, 7
  %s160 = sand.u32 %s158, 127
  %s161 = scalar_lea.vmem %s3, %s159
  %v162 = vld [vmem:[%s161] sm:$0x1]
  %s163 = scalar_lea.vmem %s5, %s159
  %v164 = vld [vmem:[%s163] sm:$0x1]
  %v166 = vperm.slane %v162, 0
  %v168 = vsub.f32 %v166, %v111
  %v169 = vsub.f32 %v166, %v114
  %v170 = vsub.f32 %v166, %v117
  %v171 = vsub.f32 %v166, %v120
  %v172 = vsub.f32 %v166, %v123
  %v173 = vsub.f32 %v166, %v126
  %v174 = vsub.f32 %v166, %v129
  %v175 = vsub.f32 %v166, %v132
  %v176 = vsub.f32 %v166, %v135
  %v177 = vsub.f32 %v166, %v138
  %v178 = vsub.f32 %v166, %v141
  %v179 = vsub.f32 %v166, %v144
  %v180 = vsub.f32 %v166, %v147
  %v181 = vsub.f32 %v166, %v150
  %v182 = vsub.f32 %v166, %v153
  %v183 = vsub.f32 %v166, %v156
  %v184 = vld [vmem:[%s4] sm:$0xff]
  %v185 = vld [vmem:[%s4 + $0x8] sm:$0xff]
  %v186 = vld [vmem:[%s4 + $0x10] sm:$0xff]
  %v187 = vld [vmem:[%s4 + $0x18] sm:$0xff]
  %v188 = vld [vmem:[%s4 + $0x20] sm:$0xff]
  %v189 = vld [vmem:[%s4 + $0x28] sm:$0xff]
  %v190 = vld [vmem:[%s4 + $0x30] sm:$0xff]
  %v191 = vld [vmem:[%s4 + $0x38] sm:$0xff]
  %v192 = vld [vmem:[%s4 + $0x40] sm:$0xff]
  %v193 = vld [vmem:[%s4 + $0x48] sm:$0xff]
  %v194 = vld [vmem:[%s4 + $0x50] sm:$0xff]
  %v195 = vld [vmem:[%s4 + $0x58] sm:$0xff]
  %v196 = vld [vmem:[%s4 + $0x60] sm:$0xff]
  %v197 = vld [vmem:[%s4 + $0x68] sm:$0xff]
  %v198 = vld [vmem:[%s4 + $0x70] sm:$0xff]
  %v199 = vld [vmem:[%s4 + $0x78] sm:$0xff]
  %200 = vset.pattern.permute.xlu0 0
  %201 = vperm.xlu0 %200, %v184
  %v202 = vpop.permute.xlu0 %201
  %203 = vset.pattern.permute.xlu0 0
  %204 = vperm.xlu0 %203, %v185
  %v205 = vpop.permute.xlu0 %204
  %206 = vset.pattern.permute.xlu0 0
  %207 = vperm.xlu0 %206, %v186
  %v208 = vpop.permute.xlu0 %207
  %209 = vset.pattern.permute.xlu0 0
  %210 = vperm.xlu0 %209, %v187
  %v211 = vpop.permute.xlu0 %210
  %212 = vset.pattern.permute.xlu0 0
  %213 = vperm.xlu0 %212, %v188
  %v214 = vpop.permute.xlu0 %213
  %215 = vset.pattern.permute.xlu0 0
  %216 = vperm.xlu0 %215, %v189
  %v217 = vpop.permute.xlu0 %216
  %218 = vset.pattern.permute.xlu0 0
  %219 = vperm.xlu0 %218, %v190
  %v220 = vpop.permute.xlu0 %219
  %221 = vset.pattern.permute.xlu0 0
  %222 = vperm.xlu0 %221, %v191
  %v223 = vpop.permute.xlu0 %222
  %224 = vset.pattern.permute.xlu0 0
  %225 = vperm.xlu0 %224, %v192
  %v226 = vpop.permute.xlu0 %225
  %227 = vset.pattern.permute.xlu0 0
  %228 = vperm.xlu0 %227, %v193
  %v229 = vpop.permute.xlu0 %228
  %230 = vset.pattern.permute.xlu0 0
  %231 = vperm.xlu0 %230, %v194
  %v232 = vpop.permute.xlu0 %231
  %233 = vset.pattern.permute.xlu0 0
  %234 = vperm.xlu0 %233, %v195
  %v235 = vpop.permute.xlu0 %234
  %236 = vset.pattern.permute.xlu0 0
  %237 = vperm.xlu0 %236, %v196
  %v238 = vpop.permute.xlu0 %237
  %239 = vset.pattern.permute.xlu0 0
  %240 = vperm.xlu0 %239, %v197
  %v241 = vpop.permute.xlu0 %240
  %242 = vset.pattern.permute.xlu0 0
  %243 = vperm.xlu0 %242, %v198
  %v244 = vpop.permute.xlu0 %243
  %245 = vset.pattern.permute.xlu0 0
  %246 = vperm.xlu0 %245, %v199
  %v247 = vpop.permute.xlu0 %246
  %v248 = vperm.slane %v164, 0
  %vm249 = vcmp.eq.s32.totalorder %v202, %v248
  %vm250 = vcmp.eq.s32.totalorder %v205, %v248
  %vm251 = vcmp.eq.s32.totalorder %v208, %v248
  %vm252 = vcmp.eq.s32.totalorder %v211, %v248
  %vm253 = vcmp.eq.s32.totalorder %v214, %v248
  %vm254 = vcmp.eq.s32.totalorder %v217, %v248
  %vm255 = vcmp.eq.s32.totalorder %v220, %v248
  %vm256 = vcmp.eq.s32.totalorder %v223, %v248
  %vm257 = vcmp.eq.s32.totalorder %v226, %v248
  %vm258 = vcmp.eq.s32.totalorder %v229, %v248
  %vm259 = vcmp.eq.s32.totalorder %v232, %v248
  %vm260 = vcmp.eq.s32.totalorder %v235, %v248
  %vm261 = vcmp.eq.s32.totalorder %v238, %v248
  %vm262 = vcmp.eq.s32.totalorder %v241, %v248
  %vm263 = vcmp.eq.s32.totalorder %v244, %v248
  %vm264 = vcmp.eq.s32.totalorder %v247, %v248
  %v265 = vsel %vm249, %v168, -3e+38
  %v266 = vsel %vm250, %v169, -3e+38
  %v267 = vsel %vm251, %v170, -3e+38
  %v268 = vsel %vm252, %v171, -3e+38
  %v269 = vsel %vm253, %v172, -3e+38
  %v270 = vsel %vm254, %v173, -3e+38
  %v271 = vsel %vm255, %v174, -3e+38
  %v272 = vsel %vm256, %v175, -3e+38
  %v273 = vsel %vm257, %v176, -3e+38
  %v274 = vsel %vm258, %v177, -3e+38
  %v275 = vsel %vm259, %v178, -3e+38
  %v276 = vsel %vm260, %v179, -3e+38
  %v277 = vsel %vm261, %v180, -3e+38
  %v278 = vsel %vm262, %v181, -3e+38
  %v279 = vsel %vm263, %v182, -3e+38
  %v280 = vsel %vm264, %v183, -3e+38
  %v281 = vsel %vm249, 3e+38, %v168
  %v282 = vsel %vm250, 3e+38, %v169
  %v283 = vsel %vm251, 3e+38, %v170
  %v284 = vsel %vm252, 3e+38, %v171
  %v285 = vsel %vm253, 3e+38, %v172
  %v286 = vsel %vm254, 3e+38, %v173
  %v287 = vsel %vm255, 3e+38, %v174
  %v288 = vsel %vm256, 3e+38, %v175
  %v289 = vsel %vm257, 3e+38, %v176
  %v290 = vsel %vm258, 3e+38, %v177
  %v291 = vsel %vm259, 3e+38, %v178
  %v292 = vsel %vm260, 3e+38, %v179
  %v293 = vsel %vm261, 3e+38, %v180
  %v294 = vsel %vm262, 3e+38, %v181
  %v295 = vsel %vm263, 3e+38, %v182
  %v296 = vsel %vm264, 3e+38, %v183
  %v297 = vld [vmem:[#allocation2] sm:$0xff]
  %v298 = vld [vmem:[#allocation2 + $0x8] sm:$0xff]
  %v299 = vld [vmem:[#allocation2 + $0x10] sm:$0xff]
  %v300 = vld [vmem:[#allocation2 + $0x18] sm:$0xff]
  %v301 = vld [vmem:[#allocation2 + $0x20] sm:$0xff]
  %v302 = vld [vmem:[#allocation2 + $0x28] sm:$0xff]
  %v303 = vld [vmem:[#allocation2 + $0x30] sm:$0xff]
  %v304 = vld [vmem:[#allocation2 + $0x38] sm:$0xff]
  %v305 = vld [vmem:[#allocation2 + $0x40] sm:$0xff]
  %v306 = vld [vmem:[#allocation2 + $0x48] sm:$0xff]
  %v307 = vld [vmem:[#allocation2 + $0x50] sm:$0xff]
  %v308 = vld [vmem:[#allocation2 + $0x58] sm:$0xff]
  %v309 = vld [vmem:[#allocation2 + $0x60] sm:$0xff]
  %v310 = vld [vmem:[#allocation2 + $0x68] sm:$0xff]
  %v311 = vld [vmem:[#allocation2 + $0x70] sm:$0xff]
  %v312 = vld [vmem:[#allocation2 + $0x78] sm:$0xff]
  %v313 = vmax.f32 %v297, %v265
  %v314 = vmax.f32 %v298, %v266
  %v315 = vmax.f32 %v299, %v267
  %v316 = vmax.f32 %v300, %v268
  %v317 = vmax.f32 %v301, %v269
  %v318 = vmax.f32 %v302, %v270
  %v319 = vmax.f32 %v303, %v271
  %v320 = vmax.f32 %v304, %v272
  %v321 = vmax.f32 %v305, %v273
  %v322 = vmax.f32 %v306, %v274
  %v323 = vmax.f32 %v307, %v275
  %v324 = vmax.f32 %v308, %v276
  %v325 = vmax.f32 %v309, %v277
  %v326 = vmax.f32 %v310, %v278
  %v327 = vmax.f32 %v311, %v279
  %v328 = vmax.f32 %v312, %v280
  %329 = vst [vmem:[#allocation2] sm:$0xff] %v313
  %330 = vst [vmem:[#allocation2 + $0x8] sm:$0xff] %v314
  %331 = vst [vmem:[#allocation2 + $0x10] sm:$0xff] %v315
  %332 = vst [vmem:[#allocation2 + $0x18] sm:$0xff] %v316
  %333 = vst [vmem:[#allocation2 + $0x20] sm:$0xff] %v317
  %334 = vst [vmem:[#allocation2 + $0x28] sm:$0xff] %v318
  %335 = vst [vmem:[#allocation2 + $0x30] sm:$0xff] %v319
  %336 = vst [vmem:[#allocation2 + $0x38] sm:$0xff] %v320
  %337 = vst [vmem:[#allocation2 + $0x40] sm:$0xff] %v321
  %338 = vst [vmem:[#allocation2 + $0x48] sm:$0xff] %v322
  %339 = vst [vmem:[#allocation2 + $0x50] sm:$0xff] %v323
  %340 = vst [vmem:[#allocation2 + $0x58] sm:$0xff] %v324
  %341 = vst [vmem:[#allocation2 + $0x60] sm:$0xff] %v325
  %342 = vst [vmem:[#allocation2 + $0x68] sm:$0xff] %v326
  %343 = vst [vmem:[#allocation2 + $0x70] sm:$0xff] %v327
  %344 = vst [vmem:[#allocation2 + $0x78] sm:$0xff] %v328
  %v345 = vld [vmem:[#allocation3] sm:$0xff]
  %v346 = vld [vmem:[#allocation3 + $0x8] sm:$0xff]
  %v347 = vld [vmem:[#allocation3 + $0x10] sm:$0xff]
  %v348 = vld [vmem:[#allocation3 + $0x18] sm:$0xff]
  %v349 = vld [vmem:[#allocation3 + $0x20] sm:$0xff]
  %v350 = vld [vmem:[#allocation3 + $0x28] sm:$0xff]
  %v351 = vld [vmem:[#allocation3 + $0x30] sm:$0xff]
  %v352 = vld [vmem:[#allocation3 + $0x38] sm:$0xff]
  %v353 = vld [vmem:[#allocation3 + $0x40] sm:$0xff]
  %v354 = vld [vmem:[#allocation3 + $0x48] sm:$0xff]
  %v355 = vld [vmem:[#allocation3 + $0x50] sm:$0xff]
  %v356 = vld [vmem:[#allocation3 + $0x58] sm:$0xff]
  %v357 = vld [vmem:[#allocation3 + $0x60] sm:$0xff]
  %v358 = vld [vmem:[#allocation3 + $0x68] sm:$0xff]
  %v359 = vld [vmem:[#allocation3 + $0x70] sm:$0xff]
  %v360 = vld [vmem:[#allocation3 + $0x78] sm:$0xff]
  %v361 = vmin.f32 %v345, %v281
  %v362 = vmin.f32 %v346, %v282
  %v363 = vmin.f32 %v347, %v283
  %v364 = vmin.f32 %v348, %v284
  %v365 = vmin.f32 %v349, %v285
  %v366 = vmin.f32 %v350, %v286
  %v367 = vmin.f32 %v351, %v287
  %v368 = vmin.f32 %v352, %v288
  %v369 = vmin.f32 %v353, %v289
  %v370 = vmin.f32 %v354, %v290
  %v371 = vmin.f32 %v355, %v291
  %v372 = vmin.f32 %v356, %v292
  %v373 = vmin.f32 %v357, %v293
  %v374 = vmin.f32 %v358, %v294
  %v375 = vmin.f32 %v359, %v295
  %v376 = vmin.f32 %v360, %v296
  %377 = vst [vmem:[#allocation3] sm:$0xff] %v361
  %378 = vst [vmem:[#allocation3 + $0x8] sm:$0xff] %v362
  %379 = vst [vmem:[#allocation3 + $0x10] sm:$0xff] %v363
  %380 = vst [vmem:[#allocation3 + $0x18] sm:$0xff] %v364
  %381 = vst [vmem:[#allocation3 + $0x20] sm:$0xff] %v365
  %382 = vst [vmem:[#allocation3 + $0x28] sm:$0xff] %v366
  %383 = vst [vmem:[#allocation3 + $0x30] sm:$0xff] %v367
  %384 = vst [vmem:[#allocation3 + $0x38] sm:$0xff] %v368
  %385 = vst [vmem:[#allocation3 + $0x40] sm:$0xff] %v369
  %386 = vst [vmem:[#allocation3 + $0x48] sm:$0xff] %v370
  %387 = vst [vmem:[#allocation3 + $0x50] sm:$0xff] %v371
  %388 = vst [vmem:[#allocation3 + $0x58] sm:$0xff] %v372
  %389 = vst [vmem:[#allocation3 + $0x60] sm:$0xff] %v373
  %390 = vst [vmem:[#allocation3 + $0x68] sm:$0xff] %v374
  %391 = vst [vmem:[#allocation3 + $0x70] sm:$0xff] %v375
  %392 = vst [vmem:[#allocation3 + $0x78] sm:$0xff] %v376
  // Predicated region
  $region30: #{tpu_custom_call.1} parent=0 // pred_check
    %p393 = pneg %p25
  $region31: #{tpu_custom_call.1} parent=0 // pred_check_branch
    %395 = sbr.rel (%p393) target = $region33
  $region32: #{tpu_custom_call.1} parent=0 // pred_region
    %v396 = vld [vmem:[%s2] sm:$0xff]
    %v397 = vld [vmem:[%s2 + $0x8] sm:$0xff]
    %v398 = vld [vmem:[%s2 + $0x10] sm:$0xff]
    %v399 = vld [vmem:[%s2 + $0x18] sm:$0xff]
    %v400 = vld [vmem:[%s2 + $0x20] sm:$0xff]
    %v401 = vld [vmem:[%s2 + $0x28] sm:$0xff]
    %v402 = vld [vmem:[%s2 + $0x30] sm:$0xff]
    %v403 = vld [vmem:[%s2 + $0x38] sm:$0xff]
    %v404 = vld [vmem:[%s2 + $0x40] sm:$0xff]
    %v405 = vld [vmem:[%s2 + $0x48] sm:$0xff]
    %v406 = vld [vmem:[%s2 + $0x50] sm:$0xff]
    %v407 = vld [vmem:[%s2 + $0x58] sm:$0xff]
    %v408 = vld [vmem:[%s2 + $0x60] sm:$0xff]
    %v409 = vld [vmem:[%s2 + $0x68] sm:$0xff]
    %v410 = vld [vmem:[%s2 + $0x70] sm:$0xff]
    %v411 = vld [vmem:[%s2 + $0x78] sm:$0xff]
    %v412 = vld [vmem:[#allocation2] sm:$0xff]
    %v413 = vld [vmem:[#allocation2 + $0x8] sm:$0xff]
    %v414 = vld [vmem:[#allocation2 + $0x10] sm:$0xff]
    %v415 = vld [vmem:[#allocation2 + $0x18] sm:$0xff]
    %v416 = vld [vmem:[#allocation2 + $0x20] sm:$0xff]
    %v417 = vld [vmem:[#allocation2 + $0x28] sm:$0xff]
    %v418 = vld [vmem:[#allocation2 + $0x30] sm:$0xff]
    %v419 = vld [vmem:[#allocation2 + $0x38] sm:$0xff]
    %v420 = vld [vmem:[#allocation2 + $0x40] sm:$0xff]
    %v421 = vld [vmem:[#allocation2 + $0x48] sm:$0xff]
    %v422 = vld [vmem:[#allocation2 + $0x50] sm:$0xff]
    %v423 = vld [vmem:[#allocation2 + $0x58] sm:$0xff]
    %v424 = vld [vmem:[#allocation2 + $0x60] sm:$0xff]
    %v425 = vld [vmem:[#allocation2 + $0x68] sm:$0xff]
    %v426 = vld [vmem:[#allocation2 + $0x70] sm:$0xff]
    %v427 = vld [vmem:[#allocation2 + $0x78] sm:$0xff]
    %428 = vmax.xlane.f32.xlu0 %v412
    %v429 = vpop.xlane.xlu0 %428
    %430 = vmax.xlane.f32.xlu0 %v413
    %v431 = vpop.xlane.xlu0 %430
    %432 = vmax.xlane.f32.xlu0 %v414
    %v433 = vpop.xlane.xlu0 %432
    %434 = vmax.xlane.f32.xlu0 %v415
    %v435 = vpop.xlane.xlu0 %434
    %436 = vmax.xlane.f32.xlu0 %v416
    %v437 = vpop.xlane.xlu0 %436
    %438 = vmax.xlane.f32.xlu0 %v417
    %v439 = vpop.xlane.xlu0 %438
    %440 = vmax.xlane.f32.xlu0 %v418
    %v441 = vpop.xlane.xlu0 %440
    %442 = vmax.xlane.f32.xlu0 %v419
    %v443 = vpop.xlane.xlu0 %442
    %444 = vmax.xlane.f32.xlu0 %v420
    %v445 = vpop.xlane.xlu0 %444
    %446 = vmax.xlane.f32.xlu0 %v421
    %v447 = vpop.xlane.xlu0 %446
    %448 = vmax.xlane.f32.xlu0 %v422
    %v449 = vpop.xlane.xlu0 %448
    %450 = vmax.xlane.f32.xlu0 %v423
    %v451 = vpop.xlane.xlu0 %450
    %452 = vmax.xlane.f32.xlu0 %v424
    %v453 = vpop.xlane.xlu0 %452
    %454 = vmax.xlane.f32.xlu0 %v425
    %v455 = vpop.xlane.xlu0 %454
    %456 = vmax.xlane.f32.xlu0 %v426
    %v457 = vpop.xlane.xlu0 %456
    %458 = vmax.xlane.f32.xlu0 %v427
    %v459 = vpop.xlane.xlu0 %458
    %v460 = vmul.f32 %v429, 2.0
    %v461 = vmul.f32 %v431, 2.0
    %v462 = vmul.f32 %v433, 2.0
    %v463 = vmul.f32 %v435, 2.0
    %v464 = vmul.f32 %v437, 2.0
    %v465 = vmul.f32 %v439, 2.0
    %v466 = vmul.f32 %v441, 2.0
    %v467 = vmul.f32 %v443, 2.0
    %v468 = vmul.f32 %v445, 2.0
    %v469 = vmul.f32 %v447, 2.0
    %v470 = vmul.f32 %v449, 2.0
    %v471 = vmul.f32 %v451, 2.0
    %v472 = vmul.f32 %v453, 2.0
    %v473 = vmul.f32 %v455, 2.0
    %v474 = vmul.f32 %v457, 2.0
    %v475 = vmul.f32 %v459, 2.0
    %v476 = vadd.f32 %v396, %v460
    %v477 = vadd.f32 %v397, %v461
    %v478 = vadd.f32 %v398, %v462
    %v479 = vadd.f32 %v399, %v463
    %v480 = vadd.f32 %v400, %v464
    %v481 = vadd.f32 %v401, %v465
    %v482 = vadd.f32 %v402, %v466
    %v483 = vadd.f32 %v403, %v467
    %v484 = vadd.f32 %v404, %v468
    %v485 = vadd.f32 %v405, %v469
    %v486 = vadd.f32 %v406, %v470
    %v487 = vadd.f32 %v407, %v471
    %v488 = vadd.f32 %v408, %v472
    %v489 = vadd.f32 %v409, %v473
    %v490 = vadd.f32 %v410, %v474
    %v491 = vadd.f32 %v411, %v475
    %v492 = vld [vmem:[#allocation3] sm:$0xff]
    %v493 = vld [vmem:[#allocation3 + $0x8] sm:$0xff]
    %v494 = vld [vmem:[#allocation3 + $0x10] sm:$0xff]
    %v495 = vld [vmem:[#allocation3 + $0x18] sm:$0xff]
    %v496 = vld [vmem:[#allocation3 + $0x20] sm:$0xff]
    %v497 = vld [vmem:[#allocation3 + $0x28] sm:$0xff]
    %v498 = vld [vmem:[#allocation3 + $0x30] sm:$0xff]
    %v499 = vld [vmem:[#allocation3 + $0x38] sm:$0xff]
    %v500 = vld [vmem:[#allocation3 + $0x40] sm:$0xff]
    %v501 = vld [vmem:[#allocation3 + $0x48] sm:$0xff]
    %v502 = vld [vmem:[#allocation3 + $0x50] sm:$0xff]
    %v503 = vld [vmem:[#allocation3 + $0x58] sm:$0xff]
    %v504 = vld [vmem:[#allocation3 + $0x60] sm:$0xff]
    %v505 = vld [vmem:[#allocation3 + $0x68] sm:$0xff]
    %v506 = vld [vmem:[#allocation3 + $0x70] sm:$0xff]
    %v507 = vld [vmem:[#allocation3 + $0x78] sm:$0xff]
    %508 = vmin.xlane.f32.xlu0 %v492
    %v509 = vpop.xlane.xlu0 %508
    %510 = vmin.xlane.f32.xlu0 %v493
    %v511 = vpop.xlane.xlu0 %510
    %512 = vmin.xlane.f32.xlu0 %v494
    %v513 = vpop.xlane.xlu0 %512
    %514 = vmin.xlane.f32.xlu0 %v495
    %v515 = vpop.xlane.xlu0 %514
    %516 = vmin.xlane.f32.xlu0 %v496
    %v517 = vpop.xlane.xlu0 %516
    %518 = vmin.xlane.f32.xlu0 %v497
    %v519 = vpop.xlane.xlu0 %518
    %520 = vmin.xlane.f32.xlu0 %v498
    %v521 = vpop.xlane.xlu0 %520
    %522 = vmin.xlane.f32.xlu0 %v499
    %v523 = vpop.xlane.xlu0 %522
    %524 = vmin.xlane.f32.xlu0 %v500
    %v525 = vpop.xlane.xlu0 %524
    %526 = vmin.xlane.f32.xlu0 %v501
    %v527 = vpop.xlane.xlu0 %526
    %528 = vmin.xlane.f32.xlu0 %v502
    %v529 = vpop.xlane.xlu0 %528
    %530 = vmin.xlane.f32.xlu0 %v503
    %v531 = vpop.xlane.xlu0 %530
    %532 = vmin.xlane.f32.xlu0 %v504
    %v533 = vpop.xlane.xlu0 %532
    %534 = vmin.xlane.f32.xlu0 %v505
    %v535 = vpop.xlane.xlu0 %534
    %536 = vmin.xlane.f32.xlu0 %v506
    %v537 = vpop.xlane.xlu0 %536
    %538 = vmin.xlane.f32.xlu0 %v507
    %v539 = vpop.xlane.xlu0 %538
    %v540 = vmul.f32 %v509, 2.0
    %v541 = vmul.f32 %v511, 2.0
    %v542 = vmul.f32 %v513, 2.0
    %v543 = vmul.f32 %v515, 2.0
    %v544 = vmul.f32 %v517, 2.0
    %v545 = vmul.f32 %v519, 2.0
    %v546 = vmul.f32 %v521, 2.0
    %v547 = vmul.f32 %v523, 2.0
    %v548 = vmul.f32 %v525, 2.0
    %v549 = vmul.f32 %v527, 2.0
    %v550 = vmul.f32 %v529, 2.0
    %v551 = vmul.f32 %v531, 2.0
    %v552 = vmul.f32 %v533, 2.0
    %v553 = vmul.f32 %v535, 2.0
    %v554 = vmul.f32 %v537, 2.0
    %v555 = vmul.f32 %v539, 2.0
    %v556 = vadd.f32 %v396, %v540
    %v557 = vadd.f32 %v397, %v541
    %v558 = vadd.f32 %v398, %v542
    %v559 = vadd.f32 %v399, %v543
    %v560 = vadd.f32 %v400, %v544
    %v561 = vadd.f32 %v401, %v545
    %v562 = vadd.f32 %v402, %v546
    %v563 = vadd.f32 %v403, %v547
    %v564 = vadd.f32 %v404, %v548
    %v565 = vadd.f32 %v405, %v549
    %v566 = vadd.f32 %v406, %v550
    %v567 = vadd.f32 %v407, %v551
    %v568 = vadd.f32 %v408, %v552
    %v569 = vadd.f32 %v409, %v553
    %v570 = vadd.f32 %v410, %v554
    %v571 = vadd.f32 %v411, %v555
    %v572 = vmax.f32 %v476, 1e-12
    %v573 = vmax.f32 %v477, 1e-12
    %v574 = vmax.f32 %v478, 1e-12
    %v575 = vmax.f32 %v479, 1e-12
    %v576 = vmax.f32 %v480, 1e-12
    %v577 = vmax.f32 %v481, 1e-12
    %v578 = vmax.f32 %v482, 1e-12
    %v579 = vmax.f32 %v483, 1e-12
    %v580 = vmax.f32 %v484, 1e-12
    %v581 = vmax.f32 %v485, 1e-12
    %v582 = vmax.f32 %v486, 1e-12
    %v583 = vmax.f32 %v487, 1e-12
    %v584 = vmax.f32 %v488, 1e-12
    %v585 = vmax.f32 %v489, 1e-12
    %v586 = vmax.f32 %v490, 1e-12
    %v587 = vmax.f32 %v491, 1e-12
    %v588 = vrsqrt.pop %v572
    %v589 = vmul.f32 %v588, %v572
    %v590 = vmul.f32 %v589, %v588
    %v591 = vmul.f32 0.5, %v590
    %v592 = vsub.f32 1.5, %v591
    %v593 = vmul.f32 %v588, %v592
    %v594 = vmul.f32 %v572, %v593
    %vm595 = vcmp.eq.f32.partialorder %v572, inf
    %v596 = vsel %vm595, %v572, %v594
    %vm597 = vcmp.eq.f32.partialorder %v572, 0.0
    %v598 = vand.u32 %v572, 2147483648
    %v599 = vsel %vm597, %v598, %v596
    %v600 = vrsqrt.pop %v573
    %v601 = vmul.f32 %v600, %v573
    %v602 = vmul.f32 %v601, %v600
    %v603 = vmul.f32 0.5, %v602
    %v604 = vsub.f32 1.5, %v603
    %v605 = vmul.f32 %v600, %v604
    %v606 = vmul.f32 %v573, %v605
    %vm607 = vcmp.eq.f32.partialorder %v573, inf
    %v608 = vsel %vm607, %v573, %v606
    %vm609 = vcmp.eq.f32.partialorder %v573, 0.0
    %v610 = vand.u32 %v573, 2147483648
    %v611 = vsel %vm609, %v610, %v608
    %v612 = vrsqrt.pop %v574
    %v613 = vmul.f32 %v612, %v574
    %v614 = vmul.f32 %v613, %v612
    %v615 = vmul.f32 0.5, %v614
    %v616 = vsub.f32 1.5, %v615
    %v617 = vmul.f32 %v612, %v616
    %v618 = vmul.f32 %v574, %v617
    %vm619 = vcmp.eq.f32.partialorder %v574, inf
    %v620 = vsel %vm619, %v574, %v618
    %vm621 = vcmp.eq.f32.partialorder %v574, 0.0
    %v622 = vand.u32 %v574, 2147483648
    %v623 = vsel %vm621, %v622, %v620
    %v624 = vrsqrt.pop %v575
    %v625 = vmul.f32 %v624, %v575
    %v626 = vmul.f32 %v625, %v624
    %v627 = vmul.f32 0.5, %v626
    %v628 = vsub.f32 1.5, %v627
    %v629 = vmul.f32 %v624, %v628
    %v630 = vmul.f32 %v575, %v629
    %vm631 = vcmp.eq.f32.partialorder %v575, inf
    %v632 = vsel %vm631, %v575, %v630
    %vm633 = vcmp.eq.f32.partialorder %v575, 0.0
    %v634 = vand.u32 %v575, 2147483648
    %v635 = vsel %vm633, %v634, %v632
    %v636 = vrsqrt.pop %v576
    %v637 = vmul.f32 %v636, %v576
    %v638 = vmul.f32 %v637, %v636
    %v639 = vmul.f32 0.5, %v638
    %v640 = vsub.f32 1.5, %v639
    %v641 = vmul.f32 %v636, %v640
    %v642 = vmul.f32 %v576, %v641
    %vm643 = vcmp.eq.f32.partialorder %v576, inf
    %v644 = vsel %vm643, %v576, %v642
    %vm645 = vcmp.eq.f32.partialorder %v576, 0.0
    %v646 = vand.u32 %v576, 2147483648
    %v647 = vsel %vm645, %v646, %v644
    %v648 = vrsqrt.pop %v577
    %v649 = vmul.f32 %v648, %v577
    %v650 = vmul.f32 %v649, %v648
    %v651 = vmul.f32 0.5, %v650
    %v652 = vsub.f32 1.5, %v651
    %v653 = vmul.f32 %v648, %v652
    %v654 = vmul.f32 %v577, %v653
    %vm655 = vcmp.eq.f32.partialorder %v577, inf
    %v656 = vsel %vm655, %v577, %v654
    %vm657 = vcmp.eq.f32.partialorder %v577, 0.0
    %v658 = vand.u32 %v577, 2147483648
    %v659 = vsel %vm657, %v658, %v656
    %v660 = vrsqrt.pop %v578
    %v661 = vmul.f32 %v660, %v578
    %v662 = vmul.f32 %v661, %v660
    %v663 = vmul.f32 0.5, %v662
    %v664 = vsub.f32 1.5, %v663
    %v665 = vmul.f32 %v660, %v664
    %v666 = vmul.f32 %v578, %v665
    %vm667 = vcmp.eq.f32.partialorder %v578, inf
    %v668 = vsel %vm667, %v578, %v666
    %vm669 = vcmp.eq.f32.partialorder %v578, 0.0
    %v670 = vand.u32 %v578, 2147483648
    %v671 = vsel %vm669, %v670, %v668
    %v672 = vrsqrt.pop %v579
    %v673 = vmul.f32 %v672, %v579
    %v674 = vmul.f32 %v673, %v672
    %v675 = vmul.f32 0.5, %v674
    %v676 = vsub.f32 1.5, %v675
    %v677 = vmul.f32 %v672, %v676
    %v678 = vmul.f32 %v579, %v677
    %vm679 = vcmp.eq.f32.partialorder %v579, inf
    %v680 = vsel %vm679, %v579, %v678
    %vm681 = vcmp.eq.f32.partialorder %v579, 0.0
    %v682 = vand.u32 %v579, 2147483648
    %v683 = vsel %vm681, %v682, %v680
    %v684 = vrsqrt.pop %v580
    %v685 = vmul.f32 %v684, %v580
    %v686 = vmul.f32 %v685, %v684
    %v687 = vmul.f32 0.5, %v686
    %v688 = vsub.f32 1.5, %v687
    %v689 = vmul.f32 %v684, %v688
    %v690 = vmul.f32 %v580, %v689
    %vm691 = vcmp.eq.f32.partialorder %v580, inf
    %v692 = vsel %vm691, %v580, %v690
    %vm693 = vcmp.eq.f32.partialorder %v580, 0.0
    %v694 = vand.u32 %v580, 2147483648
    %v695 = vsel %vm693, %v694, %v692
    %v696 = vrsqrt.pop %v581
    %v697 = vmul.f32 %v696, %v581
    %v698 = vmul.f32 %v697, %v696
    %v699 = vmul.f32 0.5, %v698
    %v700 = vsub.f32 1.5, %v699
    %v701 = vmul.f32 %v696, %v700
    %v702 = vmul.f32 %v581, %v701
    %vm703 = vcmp.eq.f32.partialorder %v581, inf
    %v704 = vsel %vm703, %v581, %v702
    %vm705 = vcmp.eq.f32.partialorder %v581, 0.0
    %v706 = vand.u32 %v581, 2147483648
    %v707 = vsel %vm705, %v706, %v704
    %v708 = vrsqrt.pop %v582
    %v709 = vmul.f32 %v708, %v582
    %v710 = vmul.f32 %v709, %v708
    %v711 = vmul.f32 0.5, %v710
    %v712 = vsub.f32 1.5, %v711
    %v713 = vmul.f32 %v708, %v712
    %v714 = vmul.f32 %v582, %v713
    %vm715 = vcmp.eq.f32.partialorder %v582, inf
    %v716 = vsel %vm715, %v582, %v714
    %vm717 = vcmp.eq.f32.partialorder %v582, 0.0
    %v718 = vand.u32 %v582, 2147483648
    %v719 = vsel %vm717, %v718, %v716
    %v720 = vrsqrt.pop %v583
    %v721 = vmul.f32 %v720, %v583
    %v722 = vmul.f32 %v721, %v720
    %v723 = vmul.f32 0.5, %v722
    %v724 = vsub.f32 1.5, %v723
    %v725 = vmul.f32 %v720, %v724
    %v726 = vmul.f32 %v583, %v725
    %vm727 = vcmp.eq.f32.partialorder %v583, inf
    %v728 = vsel %vm727, %v583, %v726
    %vm729 = vcmp.eq.f32.partialorder %v583, 0.0
    %v730 = vand.u32 %v583, 2147483648
    %v731 = vsel %vm729, %v730, %v728
    %v732 = vrsqrt.pop %v584
    %v733 = vmul.f32 %v732, %v584
    %v734 = vmul.f32 %v733, %v732
    %v735 = vmul.f32 0.5, %v734
    %v736 = vsub.f32 1.5, %v735
    %v737 = vmul.f32 %v732, %v736
    %v738 = vmul.f32 %v584, %v737
    %vm739 = vcmp.eq.f32.partialorder %v584, inf
    %v740 = vsel %vm739, %v584, %v738
    %vm741 = vcmp.eq.f32.partialorder %v584, 0.0
    %v742 = vand.u32 %v584, 2147483648
    %v743 = vsel %vm741, %v742, %v740
    %v744 = vrsqrt.pop %v585
    %v745 = vmul.f32 %v744, %v585
    %v746 = vmul.f32 %v745, %v744
    %v747 = vmul.f32 0.5, %v746
    %v748 = vsub.f32 1.5, %v747
    %v749 = vmul.f32 %v744, %v748
    %v750 = vmul.f32 %v585, %v749
    %vm751 = vcmp.eq.f32.partialorder %v585, inf
    %v752 = vsel %vm751, %v585, %v750
    %vm753 = vcmp.eq.f32.partialorder %v585, 0.0
    %v754 = vand.u32 %v585, 2147483648
    %v755 = vsel %vm753, %v754, %v752
    %v756 = vrsqrt.pop %v586
    %v757 = vmul.f32 %v756, %v586
    %v758 = vmul.f32 %v757, %v756
    %v759 = vmul.f32 0.5, %v758
    %v760 = vsub.f32 1.5, %v759
    %v761 = vmul.f32 %v756, %v760
    %v762 = vmul.f32 %v586, %v761
    %vm763 = vcmp.eq.f32.partialorder %v586, inf
    %v764 = vsel %vm763, %v586, %v762
    %vm765 = vcmp.eq.f32.partialorder %v586, 0.0
    %v766 = vand.u32 %v586, 2147483648
    %v767 = vsel %vm765, %v766, %v764
    %v768 = vrsqrt.pop %v587
    %v769 = vmul.f32 %v768, %v587
    %v770 = vmul.f32 %v769, %v768
    %v771 = vmul.f32 0.5, %v770
    %v772 = vsub.f32 1.5, %v771
    %v773 = vmul.f32 %v768, %v772
    %v774 = vmul.f32 %v587, %v773
    %vm775 = vcmp.eq.f32.partialorder %v587, inf
    %v776 = vsel %vm775, %v587, %v774
    %vm777 = vcmp.eq.f32.partialorder %v587, 0.0
    %v778 = vand.u32 %v587, 2147483648
    %v779 = vsel %vm777, %v778, %v776
    %v780 = vmax.f32 %v556, 1e-12
    %v781 = vmax.f32 %v557, 1e-12
    %v782 = vmax.f32 %v558, 1e-12
    %v783 = vmax.f32 %v559, 1e-12
    %v784 = vmax.f32 %v560, 1e-12
    %v785 = vmax.f32 %v561, 1e-12
    %v786 = vmax.f32 %v562, 1e-12
    %v787 = vmax.f32 %v563, 1e-12
    %v788 = vmax.f32 %v564, 1e-12
    %v789 = vmax.f32 %v565, 1e-12
    %v790 = vmax.f32 %v566, 1e-12
    %v791 = vmax.f32 %v567, 1e-12
    %v792 = vmax.f32 %v568, 1e-12
    %v793 = vmax.f32 %v569, 1e-12
    %v794 = vmax.f32 %v570, 1e-12
    %v795 = vmax.f32 %v571, 1e-12
    %v796 = vrsqrt.pop %v780
    %v797 = vmul.f32 %v796, %v780
    %v798 = vmul.f32 %v797, %v796
    %v799 = vmul.f32 0.5, %v798
    %v800 = vsub.f32 1.5, %v799
    %v801 = vmul.f32 %v796, %v800
    %v802 = vmul.f32 %v780, %v801
    %vm803 = vcmp.eq.f32.partialorder %v780, inf
    %v804 = vsel %vm803, %v780, %v802
    %vm805 = vcmp.eq.f32.partialorder %v780, 0.0
    %v806 = vand.u32 %v780, 2147483648
    %v807 = vsel %vm805, %v806, %v804
    %v808 = vrsqrt.pop %v781
    %v809 = vmul.f32 %v808, %v781
    %v810 = vmul.f32 %v809, %v808
    %v811 = vmul.f32 0.5, %v810
    %v812 = vsub.f32 1.5, %v811
    %v813 = vmul.f32 %v808, %v812
    %v814 = vmul.f32 %v781, %v813
    %vm815 = vcmp.eq.f32.partialorder %v781, inf
    %v816 = vsel %vm815, %v781, %v814
    %vm817 = vcmp.eq.f32.partialorder %v781, 0.0
    %v818 = vand.u32 %v781, 2147483648
    %v819 = vsel %vm817, %v818, %v816
    %v820 = vrsqrt.pop %v782
    %v821 = vmul.f32 %v820, %v782
    %v822 = vmul.f32 %v821, %v820
    %v823 = vmul.f32 0.5, %v822
    %v824 = vsub.f32 1.5, %v823
    %v825 = vmul.f32 %v820, %v824
    %v826 = vmul.f32 %v782, %v825
    %vm827 = vcmp.eq.f32.partialorder %v782, inf
    %v828 = vsel %vm827, %v782, %v826
    %vm829 = vcmp.eq.f32.partialorder %v782, 0.0
    %v830 = vand.u32 %v782, 2147483648
    %v831 = vsel %vm829, %v830, %v828
    %v832 = vrsqrt.pop %v783
    %v833 = vmul.f32 %v832, %v783
    %v834 = vmul.f32 %v833, %v832
    %v835 = vmul.f32 0.5, %v834
    %v836 = vsub.f32 1.5, %v835
    %v837 = vmul.f32 %v832, %v836
    %v838 = vmul.f32 %v783, %v837
    %vm839 = vcmp.eq.f32.partialorder %v783, inf
    %v840 = vsel %vm839, %v783, %v838
    %vm841 = vcmp.eq.f32.partialorder %v783, 0.0
    %v842 = vand.u32 %v783, 2147483648
    %v843 = vsel %vm841, %v842, %v840
    %v844 = vrsqrt.pop %v784
    %v845 = vmul.f32 %v844, %v784
    %v846 = vmul.f32 %v845, %v844
    %v847 = vmul.f32 0.5, %v846
    %v848 = vsub.f32 1.5, %v847
    %v849 = vmul.f32 %v844, %v848
    %v850 = vmul.f32 %v784, %v849
    %vm851 = vcmp.eq.f32.partialorder %v784, inf
    %v852 = vsel %vm851, %v784, %v850
    %vm853 = vcmp.eq.f32.partialorder %v784, 0.0
    %v854 = vand.u32 %v784, 2147483648
    %v855 = vsel %vm853, %v854, %v852
    %v856 = vrsqrt.pop %v785
    %v857 = vmul.f32 %v856, %v785
    %v858 = vmul.f32 %v857, %v856
    %v859 = vmul.f32 0.5, %v858
    %v860 = vsub.f32 1.5, %v859
    %v861 = vmul.f32 %v856, %v860
    %v862 = vmul.f32 %v785, %v861
    %vm863 = vcmp.eq.f32.partialorder %v785, inf
    %v864 = vsel %vm863, %v785, %v862
    %vm865 = vcmp.eq.f32.partialorder %v785, 0.0
    %v866 = vand.u32 %v785, 2147483648
    %v867 = vsel %vm865, %v866, %v864
    %v868 = vrsqrt.pop %v786
    %v869 = vmul.f32 %v868, %v786
    %v870 = vmul.f32 %v869, %v868
    %v871 = vmul.f32 0.5, %v870
    %v872 = vsub.f32 1.5, %v871
    %v873 = vmul.f32 %v868, %v872
    %v874 = vmul.f32 %v786, %v873
    %vm875 = vcmp.eq.f32.partialorder %v786, inf
    %v876 = vsel %vm875, %v786, %v874
    %vm877 = vcmp.eq.f32.partialorder %v786, 0.0
    %v878 = vand.u32 %v786, 2147483648
    %v879 = vsel %vm877, %v878, %v876
    %v880 = vrsqrt.pop %v787
    %v881 = vmul.f32 %v880, %v787
    %v882 = vmul.f32 %v881, %v880
    %v883 = vmul.f32 0.5, %v882
    %v884 = vsub.f32 1.5, %v883
    %v885 = vmul.f32 %v880, %v884
    %v886 = vmul.f32 %v787, %v885
    %vm887 = vcmp.eq.f32.partialorder %v787, inf
    %v888 = vsel %vm887, %v787, %v886
    %vm889 = vcmp.eq.f32.partialorder %v787, 0.0
    %v890 = vand.u32 %v787, 2147483648
    %v891 = vsel %vm889, %v890, %v888
    %v892 = vrsqrt.pop %v788
    %v893 = vmul.f32 %v892, %v788
    %v894 = vmul.f32 %v893, %v892
    %v895 = vmul.f32 0.5, %v894
    %v896 = vsub.f32 1.5, %v895
    %v897 = vmul.f32 %v892, %v896
    %v898 = vmul.f32 %v788, %v897
    %vm899 = vcmp.eq.f32.partialorder %v788, inf
    %v900 = vsel %vm899, %v788, %v898
    %vm901 = vcmp.eq.f32.partialorder %v788, 0.0
    %v902 = vand.u32 %v788, 2147483648
    %v903 = vsel %vm901, %v902, %v900
    %v904 = vrsqrt.pop %v789
    %v905 = vmul.f32 %v904, %v789
    %v906 = vmul.f32 %v905, %v904
    %v907 = vmul.f32 0.5, %v906
    %v908 = vsub.f32 1.5, %v907
    %v909 = vmul.f32 %v904, %v908
    %v910 = vmul.f32 %v789, %v909
    %vm911 = vcmp.eq.f32.partialorder %v789, inf
    %v912 = vsel %vm911, %v789, %v910
    %vm913 = vcmp.eq.f32.partialorder %v789, 0.0
    %v914 = vand.u32 %v789, 2147483648
    %v915 = vsel %vm913, %v914, %v912
    %v916 = vrsqrt.pop %v790
    %v917 = vmul.f32 %v916, %v790
    %v918 = vmul.f32 %v917, %v916
    %v919 = vmul.f32 0.5, %v918
    %v920 = vsub.f32 1.5, %v919
    %v921 = vmul.f32 %v916, %v920
    %v922 = vmul.f32 %v790, %v921
    %vm923 = vcmp.eq.f32.partialorder %v790, inf
    %v924 = vsel %vm923, %v790, %v922
    %vm925 = vcmp.eq.f32.partialorder %v790, 0.0
    %v926 = vand.u32 %v790, 2147483648
    %v927 = vsel %vm925, %v926, %v924
    %v928 = vrsqrt.pop %v791
    %v929 = vmul.f32 %v928, %v791
    %v930 = vmul.f32 %v929, %v928
    %v931 = vmul.f32 0.5, %v930
    %v932 = vsub.f32 1.5, %v931
    %v933 = vmul.f32 %v928, %v932
    %v934 = vmul.f32 %v791, %v933
    %vm935 = vcmp.eq.f32.partialorder %v791, inf
    %v936 = vsel %vm935, %v791, %v934
    %vm937 = vcmp.eq.f32.partialorder %v791, 0.0
    %v938 = vand.u32 %v791, 2147483648
    %v939 = vsel %vm937, %v938, %v936
    %v940 = vrsqrt.pop %v792
    %v941 = vmul.f32 %v940, %v792
    %v942 = vmul.f32 %v941, %v940
    %v943 = vmul.f32 0.5, %v942
    %v944 = vsub.f32 1.5, %v943
    %v945 = vmul.f32 %v940, %v944
    %v946 = vmul.f32 %v792, %v945
    %vm947 = vcmp.eq.f32.partialorder %v792, inf
    %v948 = vsel %vm947, %v792, %v946
    %vm949 = vcmp.eq.f32.partialorder %v792, 0.0
    %v950 = vand.u32 %v792, 2147483648
    %v951 = vsel %vm949, %v950, %v948
    %v952 = vrsqrt.pop %v793
    %v953 = vmul.f32 %v952, %v793
    %v954 = vmul.f32 %v953, %v952
    %v955 = vmul.f32 0.5, %v954
    %v956 = vsub.f32 1.5, %v955
    %v957 = vmul.f32 %v952, %v956
    %v958 = vmul.f32 %v793, %v957
    %vm959 = vcmp.eq.f32.partialorder %v793, inf
    %v960 = vsel %vm959, %v793, %v958
    %vm961 = vcmp.eq.f32.partialorder %v793, 0.0
    %v962 = vand.u32 %v793, 2147483648
    %v963 = vsel %vm961, %v962, %v960
    %v964 = vrsqrt.pop %v794
    %v965 = vmul.f32 %v964, %v794
    %v966 = vmul.f32 %v965, %v964
    %v967 = vmul.f32 0.5, %v966
    %v968 = vsub.f32 1.5, %v967
    %v969 = vmul.f32 %v964, %v968
    %v970 = vmul.f32 %v794, %v969
    %vm971 = vcmp.eq.f32.partialorder %v794, inf
    %v972 = vsel %vm971, %v794, %v970
    %vm973 = vcmp.eq.f32.partialorder %v794, 0.0
    %v974 = vand.u32 %v794, 2147483648
    %v975 = vsel %vm973, %v974, %v972
    %v976 = vrsqrt.pop %v795
    %v977 = vmul.f32 %v976, %v795
    %v978 = vmul.f32 %v977, %v976
    %v979 = vmul.f32 0.5, %v978
    %v980 = vsub.f32 1.5, %v979
    %v981 = vmul.f32 %v976, %v980
    %v982 = vmul.f32 %v795, %v981
    %vm983 = vcmp.eq.f32.partialorder %v795, inf
    %v984 = vsel %vm983, %v795, %v982
    %vm985 = vcmp.eq.f32.partialorder %v795, 0.0
    %v986 = vand.u32 %v795, 2147483648
    %v987 = vsel %vm985, %v986, %v984
    %v988 = vld [vmem:[%s4] sm:$0xff]
    %v989 = vld [vmem:[%s4 + $0x8] sm:$0xff]
    %v990 = vld [vmem:[%s4 + $0x10] sm:$0xff]
    %v991 = vld [vmem:[%s4 + $0x18] sm:$0xff]
    %v992 = vld [vmem:[%s4 + $0x20] sm:$0xff]
    %v993 = vld [vmem:[%s4 + $0x28] sm:$0xff]
    %v994 = vld [vmem:[%s4 + $0x30] sm:$0xff]
    %v995 = vld [vmem:[%s4 + $0x38] sm:$0xff]
    %v996 = vld [vmem:[%s4 + $0x40] sm:$0xff]
    %v997 = vld [vmem:[%s4 + $0x48] sm:$0xff]
    %v998 = vld [vmem:[%s4 + $0x50] sm:$0xff]
    %v999 = vld [vmem:[%s4 + $0x58] sm:$0xff]
    %v1000 = vld [vmem:[%s4 + $0x60] sm:$0xff]
    %v1001 = vld [vmem:[%s4 + $0x68] sm:$0xff]
    %v1002 = vld [vmem:[%s4 + $0x70] sm:$0xff]
    %v1003 = vld [vmem:[%s4 + $0x78] sm:$0xff]
    %vm1004 = vcmp.ge.s32.totalorder %v988, 0
    %vm1005 = vcmp.ge.s32.totalorder %v989, 0
    %vm1006 = vcmp.ge.s32.totalorder %v990, 0
    %vm1007 = vcmp.ge.s32.totalorder %v991, 0
    %vm1008 = vcmp.ge.s32.totalorder %v992, 0
    %vm1009 = vcmp.ge.s32.totalorder %v993, 0
    %vm1010 = vcmp.ge.s32.totalorder %v994, 0
    %vm1011 = vcmp.ge.s32.totalorder %v995, 0
    %vm1012 = vcmp.ge.s32.totalorder %v996, 0
    %vm1013 = vcmp.ge.s32.totalorder %v997, 0
    %vm1014 = vcmp.ge.s32.totalorder %v998, 0
    %vm1015 = vcmp.ge.s32.totalorder %v999, 0
    %vm1016 = vcmp.ge.s32.totalorder %v1000, 0
    %vm1017 = vcmp.ge.s32.totalorder %v1001, 0
    %vm1018 = vcmp.ge.s32.totalorder %v1002, 0
    %vm1019 = vcmp.ge.s32.totalorder %v1003, 0
    %v1020 = vsub.f32 %v599, %v807
    %v1021 = vsub.f32 %v611, %v819
    %v1022 = vsub.f32 %v623, %v831
    %v1023 = vsub.f32 %v635, %v843
    %v1024 = vsub.f32 %v647, %v855
    %v1025 = vsub.f32 %v659, %v867
    %v1026 = vsub.f32 %v671, %v879
    %v1027 = vsub.f32 %v683, %v891
    %v1028 = vsub.f32 %v695, %v903
    %v1029 = vsub.f32 %v707, %v915
    %v1030 = vsub.f32 %v719, %v927
    %v1031 = vsub.f32 %v731, %v939
    %v1032 = vsub.f32 %v743, %v951
    %v1033 = vsub.f32 %v755, %v963
    %v1034 = vsub.f32 %v767, %v975
    %v1035 = vsub.f32 %v779, %v987
    %v1036 = vadd.f32 %v1020, 0.3
    %v1037 = vadd.f32 %v1021, 0.3
    %v1038 = vadd.f32 %v1022, 0.3
    %v1039 = vadd.f32 %v1023, 0.3
    %v1040 = vadd.f32 %v1024, 0.3
    %v1041 = vadd.f32 %v1025, 0.3
    %v1042 = vadd.f32 %v1026, 0.3
    %v1043 = vadd.f32 %v1027, 0.3
    %v1044 = vadd.f32 %v1028, 0.3
    %v1045 = vadd.f32 %v1029, 0.3
    %v1046 = vadd.f32 %v1030, 0.3
    %v1047 = vadd.f32 %v1031, 0.3
    %v1048 = vadd.f32 %v1032, 0.3
    %v1049 = vadd.f32 %v1033, 0.3
    %v1050 = vadd.f32 %v1034, 0.3
    %v1051 = vadd.f32 %v1035, 0.3
    %v1052 = vmax.f32 %v1036, 0.0
    %v1053 = vmax.f32 %v1037, 0.0
    %v1054 = vmax.f32 %v1038, 0.0
    %v1055 = vmax.f32 %v1039, 0.0
    %v1056 = vmax.f32 %v1040, 0.0
    %v1057 = vmax.f32 %v1041, 0.0
    %v1058 = vmax.f32 %v1042, 0.0
    %v1059 = vmax.f32 %v1043, 0.0
    %v1060 = vmax.f32 %v1044, 0.0
    %v1061 = vmax.f32 %v1045, 0.0
    %v1062 = vmax.f32 %v1046, 0.0
    %v1063 = vmax.f32 %v1047, 0.0
    %v1064 = vmax.f32 %v1048, 0.0
    %v1065 = vmax.f32 %v1049, 0.0
    %v1066 = vmax.f32 %v1050, 0.0
    %v1067 = vmax.f32 %v1051, 0.0
    %v1068 = vsel %vm1004, %v1052, 0.0
    %v1069 = vsel %vm1005, %v1053, 0.0
    %v1070 = vsel %vm1006, %v1054, 0.0
    %v1071 = vsel %vm1007, %v1055, 0.0
    %v1072 = vsel %vm1008, %v1056, 0.0
    %v1073 = vsel %vm1009, %v1057, 0.0
    %v1074 = vsel %vm1010, %v1058, 0.0
    %v1075 = vsel %vm1011, %v1059, 0.0
    %v1076 = vsel %vm1012, %v1060, 0.0
    %v1077 = vsel %vm1013, %v1061, 0.0
    %v1078 = vsel %vm1014, %v1062, 0.0
    %v1079 = vsel %vm1015, %v1063, 0.0
    %v1080 = vsel %vm1016, %v1064, 0.0
    %v1081 = vsel %vm1017, %v1065, 0.0
    %v1082 = vsel %vm1018, %v1066, 0.0
    %v1083 = vsel %vm1019, %v1067, 0.0
    %vm1084 = vcmask 7168
    %1085 = vst.msk [vmem:[%s6] sm:$0xff] %vm1084, %v1068
    %1086 = vst.msk [vmem:[%s6 + $0x8] sm:$0xff] %vm1084, %v1069
    %1087 = vst.msk [vmem:[%s6 + $0x10] sm:$0xff] %vm1084, %v1070
    %1088 = vst.msk [vmem:[%s6 + $0x18] sm:$0xff] %vm1084, %v1071
    %1089 = vst.msk [vmem:[%s6 + $0x20] sm:$0xff] %vm1084, %v1072
    %1090 = vst.msk [vmem:[%s6 + $0x28] sm:$0xff] %vm1084, %v1073
    %1091 = vst.msk [vmem:[%s6 + $0x30] sm:$0xff] %vm1084, %v1074
    %1092 = vst.msk [vmem:[%s6 + $0x38] sm:$0xff] %vm1084, %v1075
    %1093 = vst.msk [vmem:[%s6 + $0x40] sm:$0xff] %vm1084, %v1076
    %1094 = vst.msk [vmem:[%s6 + $0x48] sm:$0xff] %vm1084, %v1077
    %1095 = vst.msk [vmem:[%s6 + $0x50] sm:$0xff] %vm1084, %v1078
    %1096 = vst.msk [vmem:[%s6 + $0x58] sm:$0xff] %vm1084, %v1079
    %1097 = vst.msk [vmem:[%s6 + $0x60] sm:$0xff] %vm1084, %v1080
    %1098 = vst.msk [vmem:[%s6 + $0x68] sm:$0xff] %vm1084, %v1081
    %1099 = vst.msk [vmem:[%s6 + $0x70] sm:$0xff] %vm1084, %v1082
    %1100 = vst.msk [vmem:[%s6 + $0x78] sm:$0xff] %vm1084, %v1083
    %vm1101 = vcmp.ge.f32.partialorder %v807, %v599
    %vm1102 = vcmp.ge.f32.partialorder %v819, %v611
    %vm1103 = vcmp.ge.f32.partialorder %v831, %v623
    %vm1104 = vcmp.ge.f32.partialorder %v843, %v635
    %vm1105 = vcmp.ge.f32.partialorder %v855, %v647
    %vm1106 = vcmp.ge.f32.partialorder %v867, %v659
    %vm1107 = vcmp.ge.f32.partialorder %v879, %v671
    %vm1108 = vcmp.ge.f32.partialorder %v891, %v683
    %vm1109 = vcmp.ge.f32.partialorder %v903, %v695
    %vm1110 = vcmp.ge.f32.partialorder %v915, %v707
    %vm1111 = vcmp.ge.f32.partialorder %v927, %v719
    %vm1112 = vcmp.ge.f32.partialorder %v939, %v731
    %vm1113 = vcmp.ge.f32.partialorder %v951, %v743
    %vm1114 = vcmp.ge.f32.partialorder %v963, %v755
    %vm1115 = vcmp.ge.f32.partialorder %v975, %v767
    %vm1116 = vcmp.ge.f32.partialorder %v987, %v779
    %vm1117 = vmand %vm1004, %vm1101
    %vm1118 = vmand %vm1005, %vm1102
    %vm1119 = vmand %vm1006, %vm1103
    %vm1120 = vmand %vm1007, %vm1104
    %vm1121 = vmand %vm1008, %vm1105
    %vm1122 = vmand %vm1009, %vm1106
    %vm1123 = vmand %vm1010, %vm1107
    %vm1124 = vmand %vm1011, %vm1108
    %vm1125 = vmand %vm1012, %vm1109
    %vm1126 = vmand %vm1013, %vm1110
    %vm1127 = vmand %vm1014, %vm1111
    %vm1128 = vmand %vm1015, %vm1112
    %vm1129 = vmand %vm1016, %vm1113
    %vm1130 = vmand %vm1017, %vm1114
    %vm1131 = vmand %vm1018, %vm1115
    %vm1132 = vmand %vm1019, %vm1116
    %v1133 = vsel %vm1117, 1, 0
    %v1134 = vsel %vm1118, 1, 0
    %v1135 = vsel %vm1119, 1, 0
    %v1136 = vsel %vm1120, 1, 0
    %v1137 = vsel %vm1121, 1, 0
    %v1138 = vsel %vm1122, 1, 0
    %v1139 = vsel %vm1123, 1, 0
    %v1140 = vsel %vm1124, 1, 0
    %v1141 = vsel %vm1125, 1, 0
    %v1142 = vsel %vm1126, 1, 0
    %v1143 = vsel %vm1127, 1, 0
    %v1144 = vsel %vm1128, 1, 0
    %v1145 = vsel %vm1129, 1, 0
    %v1146 = vsel %vm1130, 1, 0
    %v1147 = vsel %vm1131, 1, 0
    %v1148 = vsel %vm1132, 1, 0
    %v1149 = vcvt.s32.f32 %v1133
    %v1150 = vcvt.s32.f32 %v1134
    %v1151 = vcvt.s32.f32 %v1135
    %v1152 = vcvt.s32.f32 %v1136
    %v1153 = vcvt.s32.f32 %v1137
    %v1154 = vcvt.s32.f32 %v1138
    %v1155 = vcvt.s32.f32 %v1139
    %v1156 = vcvt.s32.f32 %v1140
    %v1157 = vcvt.s32.f32 %v1141
    %v1158 = vcvt.s32.f32 %v1142
    %v1159 = vcvt.s32.f32 %v1143
    %v1160 = vcvt.s32.f32 %v1144
    %v1161 = vcvt.s32.f32 %v1145
    %v1162 = vcvt.s32.f32 %v1146
    %v1163 = vcvt.s32.f32 %v1147
    %v1164 = vcvt.s32.f32 %v1148
    %1165 = vst.msk [vmem:[%s7] sm:$0xff] %vm1084, %v1149
    %1166 = vst.msk [vmem:[%s7 + $0x8] sm:$0xff] %vm1084, %v1150
    %1167 = vst.msk [vmem:[%s7 + $0x10] sm:$0xff] %vm1084, %v1151
    %1168 = vst.msk [vmem:[%s7 + $0x18] sm:$0xff] %vm1084, %v1152
    %1169 = vst.msk [vmem:[%s7 + $0x20] sm:$0xff] %vm1084, %v1153
    %1170 = vst.msk [vmem:[%s7 + $0x28] sm:$0xff] %vm1084, %v1154
    %1171 = vst.msk [vmem:[%s7 + $0x30] sm:$0xff] %vm1084, %v1155
    %1172 = vst.msk [vmem:[%s7 + $0x38] sm:$0xff] %vm1084, %v1156
    %1173 = vst.msk [vmem:[%s7 + $0x40] sm:$0xff] %vm1084, %v1157
    %1174 = vst.msk [vmem:[%s7 + $0x48] sm:$0xff] %vm1084, %v1158
    %1175 = vst.msk [vmem:[%s7 + $0x50] sm:$0xff] %vm1084, %v1159
    %1176 = vst.msk [vmem:[%s7 + $0x58] sm:$0xff] %vm1084, %v1160
    %1177 = vst.msk [vmem:[%s7 + $0x60] sm:$0xff] %vm1084, %v1161
    %1178 = vst.msk [vmem:[%s7 + $0x68] sm:$0xff] %vm1084, %v1162
    %1179 = vst.msk [vmem:[%s7 + $0x70] sm:$0xff] %vm1084, %v1163
    %1180 = vst.msk [vmem:[%s7 + $0x78] sm:$0xff] %vm1084, %v1164
  $region33: #{tpu_custom_call.1} parent=0 // pred_fallthru
    _
  // Predicated region
  $region34: #{tpu_custom_call.1} parent=0 // pred_check
    _
  $region35: #{tpu_custom_call.1} parent=0 // pred_check_branch
    %1182 = sbr.rel (0) target = $region37
  $region36: #{tpu_custom_call.1} parent=0 // pred_region
    _
  $region37: #{tpu_custom_call.1} parent=0 // pred_fallthru
    _
  // Predicated region
  $region38: #{tpu_custom_call.1} parent=0 // pred_check
    _
  $region39: #{tpu_custom_call.1} parent=0 // pred_check_branch
    %1184 = sbr.rel (0) target = $region41
  $region40: #{tpu_custom_call.1} parent=0 // pred_region
    _
  $region41: #{tpu_custom_call.1} parent=0 // pred_fallthru
    _
  // Predicated region
  $region42: #{tpu_custom_call.1} parent=0 // pred_check
    _
  $region43: #{tpu_custom_call.1} parent=0 // pred_check_branch
    %1186 = sbr.rel (0) target = $region45
  $region44: #{tpu_custom_call.1} parent=0 // pred_region
    _
  $region45: #{tpu_custom_call.1} parent=0 // pred_fallthru
    _
  // Predicated region
  $region46: #{tpu_custom_call.1} parent=0 // pred_check
    _
  $region47: #{tpu_custom_call.1} parent=0 // pred_check_branch
    %1188 = sbr.rel (0) target = $region49
  $region48: #{tpu_custom_call.1} parent=0 // pred_region
    _
  $region49: #{tpu_custom_call.1} parent=0 // pred_fallthru
    _

</llo_original>
